<compile_context>
chip_gen: v7x
topology: tpu7x:2x2x1
jax: 0.10.0
libtpu: 0.0.40
codegen_flags: <defaults>
</compile_context>

<pallas_src>
import functools  # noqa: F401
import math

import jax
import jax.numpy as jnp
from jax.experimental import pallas as pl
from jax.experimental.pallas import tpu as pltpu


# ----------------------------------------------------------------------------
# Fused Pallas kernel: enc1 -> ReLU -> enc2 -> dec1 -> ReLU -> dec2
# Internal layout is channels-major (C, L): L on the 128-lane axis.
# ----------------------------------------------------------------------------
def _fused_ae_kernel(x_ref,
                     w1_ref, b1_ref, w2_ref, b2_ref,
                     w3_ref, b3_ref, w4_ref, b4_ref,
                     out_ref,
                     xp_ref, h1_ref, z_ref, h2_ref):
    # x_ref: (C_in, L); w*_ref: (k, Cout, Cin); b*_ref: (Cout, 1)
    L = x_ref.shape[1]

    def stage(pad_ref, value):
        # Write `value` into columns [1, L+1) of the (C, L+2) padded scratch;
        # boundary columns are the zero padding of this conv layer.
        pad_ref[...] = jnp.zeros_like(pad_ref)
        pad_ref[:, pl.ds(1, L)] = value

    def conv3(pad_ref, w_ref, b_ref, relu):
        # out[o, l] = b[o] + sum_j sum_i w[j, o, i] * pad[i, l + j]
        acc = b_ref[...]                                   # (Cout, 1) -> broadcast over L
        for j in range(3):                                 # 3 shifted matmuls, no im2col
            acc = acc + jnp.dot(w_ref[j], pad_ref[:, pl.ds(j, L)],
                                preferred_element_type=jnp.float32)
        if relu:
            acc = jnp.maximum(acc, 0.0)
        return acc                                         # (Cout, L)

    stage(xp_ref, x_ref[...])                              # padded input
    stage(h1_ref, conv3(xp_ref, w1_ref, b1_ref, relu=True))    # enc Conv1d + ReLU
    stage(z_ref, conv3(h1_ref, w2_ref, b2_ref, relu=False))    # enc Conv1d (latent)
    stage(h2_ref, conv3(z_ref, w3_ref, b3_ref, relu=True))     # dec ConvT1d + ReLU
    y = conv3(h2_ref, w4_ref, b4_ref, relu=False)              # dec ConvT1d
    out_ref[...] = y.astype(out_ref.dtype)                 # (C_in, L): lane-dense store


def _fused_autoencoder(kp, x_ncl):
    """x_ncl: (N, C_in, L) f32; kp: prepacked matmul-ready taps/biases."""
    N, C_in, L = x_ncl.shape
    k, H, _ = kp["w1"].shape
    Z = kp["w2"].shape[1]

    def full3(a):
        return pl.BlockSpec(a.shape, lambda n: (0, 0, 0))   # resident across grid

    def full2(a):
        return pl.BlockSpec(a.shape, lambda n: (0, 0))

    flops = 2 * N * L * k * (C_in * H + H * Z + Z * H + H * C_in)
    bytes_accessed = 4 * (2 * N * C_in * L + sum(int(v.size) for v in kp.values()))

    return pl.pallas_call(
        _fused_ae_kernel,
        out_shape=jax.ShapeDtypeStruct((N, C_in, L), jnp.float32),
        grid=(N,),
        in_specs=[
            pl.BlockSpec((None, C_in, L), lambda n: (n, 0, 0)),   # one batch elem / step
            full3(kp["w1"]), full2(kp["b1"]),
            full3(kp["w2"]), full2(kp["b2"]),
            full3(kp["w3"]), full2(kp["b3"]),
            full3(kp["w4"]), full2(kp["b4"]),
        ],
        out_specs=pl.BlockSpec((None, C_in, L), lambda n: (n, 0, 0)),
        scratch_shapes=[
            pltpu.VMEM((C_in, L + 2), jnp.float32),   # padded input
            pltpu.VMEM((H, L + 2), jnp.float32),      # padded enc hidden
            pltpu.VMEM((Z, L + 2), jnp.float32),      # padded latent
            pltpu.VMEM((H, L + 2), jnp.float32),      # padded dec hidden
        ],
        compiler_params=pltpu.CompilerParams(
            dimension_semantics=("parallel",),          # shard batch across TCs (v7x)
            vmem_limit_bytes=32 * 1024 * 1024,
        ),
        cost_estimate=pl.CostEstimate(
            flops=int(flops), transcendentals=0, bytes_accessed=int(bytes_accessed)),
    )(x_ncl, kp["w1"], kp["b1"], kp["w2"], kp["b2"],
      kp["w3"], kp["b3"], kp["w4"], kp["b4"])


# ----------------------------------------------------------------------------
# One-time weight prepacking (kept out of the per-call forward path)
# ----------------------------------------------------------------------------
def _conv_taps(w_oik):
    # nn.Conv1d weight (Cout, Cin, k) -> per-tap (k, Cout, Cin)
    return jnp.transpose(w_oik, (2, 0, 1))


def _convT_taps(w_iok):
    # nn.ConvTranspose1d weight (Cin, Cout, k), stride=1, padding=1 is a Conv1d
    # with kernel-flipped, axis-swapped weight and padding' = k-1-p (=1 here).
    return jnp.flip(jnp.transpose(w_iok, (2, 1, 0)), axis=0)   # (k, Cout, Cin)


def prepack_params(params):
    return {
        "w1": _conv_taps(params["enc_w1"]),  "b1": params["enc_b1"].reshape(-1, 1),
        "w2": _conv_taps(params["enc_w2"]),  "b2": params["enc_b2"].reshape(-1, 1),
        "w3": _convT_taps(params["dec_w1"]), "b3": params["dec_b1"].reshape(-1, 1),
        "w4": _convT_taps(params["dec_w2"]), "b4": params["dec_b2"].reshape(-1, 1),
    }


# ----------------------------------------------------------------------------
# Parameter init (deterministic): kaiming_normal_ on weights, zeros on biases
# ----------------------------------------------------------------------------
def kaiming_conv_weight(key, shape):
    fan_in = shape[1] * shape[2]
    std = math.sqrt(2.0) / math.sqrt(fan_in)
    return std * jax.random.normal(key, shape, dtype=jnp.float32)


def init_autoencoder_params(key, c_in, hidden, latent, k=3):
    keys = jax.random.split(key, 4)
    return {
        # encoder Conv1d weights: (out, in, k)
        "enc_w1": kaiming_conv_weight(keys[0], (hidden, c_in, k)),
        "enc_b1": jnp.zeros((hidden,), jnp.float32),
        "enc_w2": kaiming_conv_weight(keys[1], (latent, hidden, k)),
        "enc_b2": jnp.zeros((latent,), jnp.float32),
        # decoder ConvTranspose1d weights: (in, out, k)
        "dec_w1": kaiming_conv_weight(keys[2], (latent, hidden, k)),
        "dec_b1": jnp.zeros((hidden,), jnp.float32),
        "dec_w2": kaiming_conv_weight(keys[3], (hidden, c_in, k)),
        "dec_b2": jnp.zeros((c_in,), jnp.float32),
    }


# ----------------------------------------------------------------------------
# Forward pass (mirrors AutoEncoder.forward with a ResEncoder)
# ----------------------------------------------------------------------------
def autoencoder_forward(kparams, x_nlc):
    # ResEncoder branch: x.permute(0, 2, 1)  (N, L, C) -> (N, C, L); everything
    # after the permute runs inside one fused Pallas kernel.
    x_ncl = jnp.transpose(x_nlc, (0, 2, 1))
    return _fused_autoencoder(kparams, x_ncl)   # (N, C_in, L), PyTorch layout


# ----------------------------------------------------------------------------
# Pure-jnp layer-wise reference (exact PyTorch semantics) for correctness check
# ----------------------------------------------------------------------------
def _im2col_1d(x_ncl, k, padding):
    n, c, l = x_ncl.shape
    x_pad = jnp.pad(x_ncl, ((0, 0), (0, 0), (padding, padding)))
    l_out = l + 2 * padding - (k - 1)
    windows = jnp.stack([x_pad[:, :, j:j + l_out] for j in range(k)], axis=-1)
    patches = jnp.transpose(windows, (0, 2, 1, 3)).reshape(n * l_out, c * k)
    return patches, l_out


def _ref_conv1d(x, w, b, padding, relu):
    n = x.shape[0]
    c_out, c_in, k = w.shape
    patches, l_out = _im2col_1d(x, k, padding)
    out = patches @ w.reshape(c_out, c_in * k).T + b
    if relu:
        out = jnp.maximum(out, 0.0)
    return jnp.transpose(out.reshape(n, l_out, c_out), (0, 2, 1))


def reference_forward(params, x_nlc):
    x = jnp.transpose(x_nlc, (0, 2, 1))
    h = _ref_conv1d(x, params["enc_w1"], params["enc_b1"], 1, True)
    z = _ref_conv1d(h, params["enc_w2"], params["enc_b2"], 1, False)
    k = params["dec_w1"].shape[2]
    w1 = jnp.flip(jnp.transpose(params["dec_w1"], (1, 0, 2)), axis=2)
    h = _ref_conv1d(z, w1, params["dec_b1"], k - 1 - 1, True)
    w2 = jnp.flip(jnp.transpose(params["dec_w2"], (1, 0, 2)), axis=2)
    return _ref_conv1d(h, w2, params["dec_b2"], k - 1 - 1, False)


if __name__ == "__main__":
    N, L, C_IN, HIDDEN, LATENT = 2, 16, 4, 32, 8

    key = jax.random.PRNGKey(0)
    k_param, k_x = jax.random.split(key)
    params = init_autoencoder_params(k_param, C_IN, HIDDEN, LATENT)
    kparams = prepack_params(params)
    x = jax.random.normal(k_x, (N, L, C_IN), dtype=jnp.float32)  # (batch, seq, chan)

    out = jax.jit(autoencoder_forward)(kparams, x)
    out = jax.block_until_ready(out)

    ref = reference_forward(params, x)
    assert out.shape == (N, C_IN, L), out.shape
    assert jnp.allclose(out, ref, atol=1e-4, rtol=1e-4), "mismatch vs reference"

    print("KERNEL_OK")
</pallas_src>

<mosaic_0001>
module attributes {stable_mosaic.version = 11 : i64} {
  func.func @_fused_ae_kernel(%arg0: i32, %arg1: memref<1x4x16xf32, #tpu.memory_space<vmem>>, %arg2: memref<3x32x4xf32, #tpu.memory_space<vmem>>, %arg3: memref<32x1xf32, #tpu.memory_space<vmem>>, %arg4: memref<3x8x32xf32, #tpu.memory_space<vmem>>, %arg5: memref<8x1xf32, #tpu.memory_space<vmem>>, %arg6: memref<3x32x8xf32, #tpu.memory_space<vmem>>, %arg7: memref<32x1xf32, #tpu.memory_space<vmem>>, %arg8: memref<3x4x32xf32, #tpu.memory_space<vmem>>, %arg9: memref<4x1xf32, #tpu.memory_space<vmem>>, %arg10: memref<1x4x16xf32, #tpu.memory_space<vmem>>, %arg11: memref<4x18xf32, #tpu.memory_space<vmem>>, %arg12: memref<32x18xf32, #tpu.memory_space<vmem>>, %arg13: memref<8x18xf32, #tpu.memory_space<vmem>>, %arg14: memref<32x18xf32, #tpu.memory_space<vmem>>) attributes {dimension_semantics = [#tpu.dimension_semantics<parallel>], iteration_bounds = array<i64: 2>, scalar_prefetch = 0 : i64, scratch_operands = 4 : i64, tpu.core_type = #tpu.core_type<tc>, window_params = [{transform_indices = @transform_0, window_bounds = array<i64: 1, 4, 16>}, {pipeline_mode = #tpu.pipeline_mode<synchronous>, transform_indices = @transform_1, window_bounds = array<i64: 3, 32, 4>}, {pipeline_mode = #tpu.pipeline_mode<synchronous>, transform_indices = @transform_2, window_bounds = array<i64: 32, 1>}, {pipeline_mode = #tpu.pipeline_mode<synchronous>, transform_indices = @transform_3, window_bounds = array<i64: 3, 8, 32>}, {pipeline_mode = #tpu.pipeline_mode<synchronous>, transform_indices = @transform_4, window_bounds = array<i64: 8, 1>}, {pipeline_mode = #tpu.pipeline_mode<synchronous>, transform_indices = @transform_5, window_bounds = array<i64: 3, 32, 8>}, {pipeline_mode = #tpu.pipeline_mode<synchronous>, transform_indices = @transform_6, window_bounds = array<i64: 32, 1>}, {pipeline_mode = #tpu.pipeline_mode<synchronous>, transform_indices = @transform_7, window_bounds = array<i64: 3, 4, 32>}, {pipeline_mode = #tpu.pipeline_mode<synchronous>, transform_indices = @transform_8, window_bounds = array<i64: 4, 1>}, {transform_indices = @transform_9, window_bounds = array<i64: 1, 4, 16>}]} {
    %c0 = arith.constant 0 : index
    %c0_0 = arith.constant 0 : index
    %c0_1 = arith.constant 0 : index
    %0 = vector.load %arg1[%c0, %c0_0, %c0_1] : memref<1x4x16xf32, #tpu.memory_space<vmem>>, vector<1x4x16xf32>
    %1 = vector.shape_cast %0 : vector<1x4x16xf32> to vector<4x16xf32>
    %cst = arith.constant 0.000000e+00 : f32
    %2 = vector.broadcast %cst : f32 to vector<4x18xf32>
    %c0_2 = arith.constant 0 : index
    %c0_3 = arith.constant 0 : index
    %3 = vector.load %arg11[%c0_2, %c0_3] : memref<4x18xf32, #tpu.memory_space<vmem>>, vector<4x18xf32>
    tpu.vector_store %arg11[%c0_2, %c0_3], %2 {strides = array<i32>} : memref<4x18xf32, #tpu.memory_space<vmem>>, vector<4x18xf32>,
    %c0_4 = arith.constant 0 : index
    %c1 = arith.constant 1 : index
    %4 = vector.load %arg11[%c0_4, %c1] : memref<4x18xf32, #tpu.memory_space<vmem>>, vector<4x16xf32>
    tpu.vector_store %arg11[%c0_4, %c1], %1 {strides = array<i32>} : memref<4x18xf32, #tpu.memory_space<vmem>>, vector<4x16xf32>,
    %c0_5 = arith.constant 0 : index
    %c0_6 = arith.constant 0 : index
    %5 = vector.load %arg3[%c0_5, %c0_6] : memref<32x1xf32, #tpu.memory_space<vmem>>, vector<32x1xf32>
    %c0_7 = arith.constant 0 : index
    %c0_8 = arith.constant 0 : index
    %c0_9 = arith.constant 0 : index
    %6 = vector.load %arg2[%c0_7, %c0_8, %c0_9] : memref<3x32x4xf32, #tpu.memory_space<vmem>>, vector<1x32x4xf32>
    %7 = vector.shape_cast %6 : vector<1x32x4xf32> to vector<32x4xf32>
    %c0_10 = arith.constant 0 : index
    %c0_11 = arith.constant 0 : index
    %8 = vector.load %arg11[%c0_10, %c0_11] : memref<4x18xf32, #tpu.memory_space<vmem>>, vector<4x16xf32>
    %cst_12 = arith.constant dense<0.000000e+00> : vector<32x16xf32>
    %9 = tpu.matmul %7, %8, %cst_12 {dimension_numbers = #tpu.dot_dimension_numbers<[1], [0], [0], [1], [0, 0, 1, 1], [], []>} : vector<32x4xf32>, vector<4x16xf32>, vector<32x16xf32> -> vector<32x16xf32>
    %10 = vector.broadcast %5 : vector<32x1xf32> to vector<32x16xf32>
    %11 = arith.addf %10, %9 : vector<32x16xf32>
    %c1_13 = arith.constant 1 : index
    %c0_14 = arith.constant 0 : index
    %c0_15 = arith.constant 0 : index
    %12 = vector.load %arg2[%c1_13, %c0_14, %c0_15] : memref<3x32x4xf32, #tpu.memory_space<vmem>>, vector<1x32x4xf32>
    %13 = vector.shape_cast %12 : vector<1x32x4xf32> to vector<32x4xf32>
    %c0_16 = arith.constant 0 : index
    %c1_17 = arith.constant 1 : index
    %14 = vector.load %arg11[%c0_16, %c1_17] : memref<4x18xf32, #tpu.memory_space<vmem>>, vector<4x16xf32>
    %cst_18 = arith.constant dense<0.000000e+00> : vector<32x16xf32>
    %15 = tpu.matmul %13, %14, %cst_18 {dimension_numbers = #tpu.dot_dimension_numbers<[1], [0], [0], [1], [0, 0, 1, 1], [], []>} : vector<32x4xf32>, vector<4x16xf32>, vector<32x16xf32> -> vector<32x16xf32>
    %16 = arith.addf %11, %15 : vector<32x16xf32>
    %c2 = arith.constant 2 : index
    %c0_19 = arith.constant 0 : index
    %c0_20 = arith.constant 0 : index
    %17 = vector.load %arg2[%c2, %c0_19, %c0_20] : memref<3x32x4xf32, #tpu.memory_space<vmem>>, vector<1x32x4xf32>
    %18 = vector.shape_cast %17 : vector<1x32x4xf32> to vector<32x4xf32>
    %c0_21 = arith.constant 0 : index
    %c2_22 = arith.constant 2 : index
    %19 = vector.load %arg11[%c0_21, %c2_22] : memref<4x18xf32, #tpu.memory_space<vmem>>, vector<4x16xf32>
    %cst_23 = arith.constant dense<0.000000e+00> : vector<32x16xf32>
    %20 = tpu.matmul %18, %19, %cst_23 {dimension_numbers = #tpu.dot_dimension_numbers<[1], [0], [0], [1], [0, 0, 1, 1], [], []>} : vector<32x4xf32>, vector<4x16xf32>, vector<32x16xf32> -> vector<32x16xf32>
    %21 = arith.addf %16, %20 : vector<32x16xf32>
    %cst_24 = arith.constant 0.000000e+00 : f32
    %22 = vector.broadcast %cst_24 : f32 to vector<32x16xf32>
    %23 = arith.maximumf %21, %22 : vector<32x16xf32>
    %cst_25 = arith.constant 0.000000e+00 : f32
    %24 = vector.broadcast %cst_25 : f32 to vector<32x18xf32>
    %c0_26 = arith.constant 0 : index
    %c0_27 = arith.constant 0 : index
    %25 = vector.load %arg12[%c0_26, %c0_27] : memref<32x18xf32, #tpu.memory_space<vmem>>, vector<32x18xf32>
    tpu.vector_store %arg12[%c0_26, %c0_27], %24 {strides = array<i32>} : memref<32x18xf32, #tpu.memory_space<vmem>>, vector<32x18xf32>,
    %c0_28 = arith.constant 0 : index
    %c1_29 = arith.constant 1 : index
    %26 = vector.load %arg12[%c0_28, %c1_29] : memref<32x18xf32, #tpu.memory_space<vmem>>, vector<32x16xf32>
    tpu.vector_store %arg12[%c0_28, %c1_29], %23 {strides = array<i32>} : memref<32x18xf32, #tpu.memory_space<vmem>>, vector<32x16xf32>,
    %c0_30 = arith.constant 0 : index
    %c0_31 = arith.constant 0 : index
    %27 = vector.load %arg5[%c0_30, %c0_31] : memref<8x1xf32, #tpu.memory_space<vmem>>, vector<8x1xf32>
    %c0_32 = arith.constant 0 : index
    %c0_33 = arith.constant 0 : index
    %c0_34 = arith.constant 0 : index
    %28 = vector.load %arg4[%c0_32, %c0_33, %c0_34] : memref<3x8x32xf32, #tpu.memory_space<vmem>>, vector<1x8x32xf32>
    %29 = vector.shape_cast %28 : vector<1x8x32xf32> to vector<8x32xf32>
    %c0_35 = arith.constant 0 : index
    %c0_36 = arith.constant 0 : index
    %30 = vector.load %arg12[%c0_35, %c0_36] : memref<32x18xf32, #tpu.memory_space<vmem>>, vector<32x16xf32>
    %cst_37 = arith.constant dense<0.000000e+00> : vector<8x16xf32>
    %31 = tpu.matmul %29, %30, %cst_37 {dimension_numbers = #tpu.dot_dimension_numbers<[1], [0], [0], [1], [0, 0, 1, 1], [], []>} : vector<8x32xf32>, vector<32x16xf32>, vector<8x16xf32> -> vector<8x16xf32>
    %32 = vector.broadcast %27 : vector<8x1xf32> to vector<8x16xf32>
    %33 = arith.addf %32, %31 : vector<8x16xf32>
    %c1_38 = arith.constant 1 : index
    %c0_39 = arith.constant 0 : index
    %c0_40 = arith.constant 0 : index
    %34 = vector.load %arg4[%c1_38, %c0_39, %c0_40] : memref<3x8x32xf32, #tpu.memory_space<vmem>>, vector<1x8x32xf32>
    %35 = vector.shape_cast %34 : vector<1x8x32xf32> to vector<8x32xf32>
    %c0_41 = arith.constant 0 : index
    %c1_42 = arith.constant 1 : index
    %36 = vector.load %arg12[%c0_41, %c1_42] : memref<32x18xf32, #tpu.memory_space<vmem>>, vector<32x16xf32>
    %cst_43 = arith.constant dense<0.000000e+00> : vector<8x16xf32>
    %37 = tpu.matmul %35, %36, %cst_43 {dimension_numbers = #tpu.dot_dimension_numbers<[1], [0], [0], [1], [0, 0, 1, 1], [], []>} : vector<8x32xf32>, vector<32x16xf32>, vector<8x16xf32> -> vector<8x16xf32>
    %38 = arith.addf %33, %37 : vector<8x16xf32>
    %c2_44 = arith.constant 2 : index
    %c0_45 = arith.constant 0 : index
    %c0_46 = arith.constant 0 : index
    %39 = vector.load %arg4[%c2_44, %c0_45, %c0_46] : memref<3x8x32xf32, #tpu.memory_space<vmem>>, vector<1x8x32xf32>
    %40 = vector.shape_cast %39 : vector<1x8x32xf32> to vector<8x32xf32>
    %c0_47 = arith.constant 0 : index
    %c2_48 = arith.constant 2 : index
    %41 = vector.load %arg12[%c0_47, %c2_48] : memref<32x18xf32, #tpu.memory_space<vmem>>, vector<32x16xf32>
    %cst_49 = arith.constant dense<0.000000e+00> : vector<8x16xf32>
    %42 = tpu.matmul %40, %41, %cst_49 {dimension_numbers = #tpu.dot_dimension_numbers<[1], [0], [0], [1], [0, 0, 1, 1], [], []>} : vector<8x32xf32>, vector<32x16xf32>, vector<8x16xf32> -> vector<8x16xf32>
    %43 = arith.addf %38, %42 : vector<8x16xf32>
    %cst_50 = arith.constant 0.000000e+00 : f32
    %44 = vector.broadcast %cst_50 : f32 to vector<8x18xf32>
    %c0_51 = arith.constant 0 : index
    %c0_52 = arith.constant 0 : index
    %45 = vector.load %arg13[%c0_51, %c0_52] : memref<8x18xf32, #tpu.memory_space<vmem>>, vector<8x18xf32>
    tpu.vector_store %arg13[%c0_51, %c0_52], %44 {strides = array<i32>} : memref<8x18xf32, #tpu.memory_space<vmem>>, vector<8x18xf32>,
    %c0_53 = arith.constant 0 : index
    %c1_54 = arith.constant 1 : index
    %46 = vector.load %arg13[%c0_53, %c1_54] : memref<8x18xf32, #tpu.memory_space<vmem>>, vector<8x16xf32>
    tpu.vector_store %arg13[%c0_53, %c1_54], %43 {strides = array<i32>} : memref<8x18xf32, #tpu.memory_space<vmem>>, vector<8x16xf32>,
    %c0_55 = arith.constant 0 : index
    %c0_56 = arith.constant 0 : index
    %47 = vector.load %arg7[%c0_55, %c0_56] : memref<32x1xf32, #tpu.memory_space<vmem>>, vector<32x1xf32>
    %c0_57 = arith.constant 0 : index
    %c0_58 = arith.constant 0 : index
    %c0_59 = arith.constant 0 : index
    %48 = vector.load %arg6[%c0_57, %c0_58, %c0_59] : memref<3x32x8xf32, #tpu.memory_space<vmem>>, vector<1x32x8xf32>
    %49 = vector.shape_cast %48 : vector<1x32x8xf32> to vector<32x8xf32>
    %c0_60 = arith.constant 0 : index
    %c0_61 = arith.constant 0 : index
    %50 = vector.load %arg13[%c0_60, %c0_61] : memref<8x18xf32, #tpu.memory_space<vmem>>, vector<8x16xf32>
    %cst_62 = arith.constant dense<0.000000e+00> : vector<32x16xf32>
    %51 = tpu.matmul %49, %50, %cst_62 {dimension_numbers = #tpu.dot_dimension_numbers<[1], [0], [0], [1], [0, 0, 1, 1], [], []>} : vector<32x8xf32>, vector<8x16xf32>, vector<32x16xf32> -> vector<32x16xf32>
    %52 = vector.broadcast %47 : vector<32x1xf32> to vector<32x16xf32>
    %53 = arith.addf %52, %51 : vector<32x16xf32>
    %c1_63 = arith.constant 1 : index
    %c0_64 = arith.constant 0 : index
    %c0_65 = arith.constant 0 : index
    %54 = vector.load %arg6[%c1_63, %c0_64, %c0_65] : memref<3x32x8xf32, #tpu.memory_space<vmem>>, vector<1x32x8xf32>
    %55 = vector.shape_cast %54 : vector<1x32x8xf32> to vector<32x8xf32>
    %c0_66 = arith.constant 0 : index
    %c1_67 = arith.constant 1 : index
    %56 = vector.load %arg13[%c0_66, %c1_67] : memref<8x18xf32, #tpu.memory_space<vmem>>, vector<8x16xf32>
    %cst_68 = arith.constant dense<0.000000e+00> : vector<32x16xf32>
    %57 = tpu.matmul %55, %56, %cst_68 {dimension_numbers = #tpu.dot_dimension_numbers<[1], [0], [0], [1], [0, 0, 1, 1], [], []>} : vector<32x8xf32>, vector<8x16xf32>, vector<32x16xf32> -> vector<32x16xf32>
    %58 = arith.addf %53, %57 : vector<32x16xf32>
    %c2_69 = arith.constant 2 : index
    %c0_70 = arith.constant 0 : index
    %c0_71 = arith.constant 0 : index
    %59 = vector.load %arg6[%c2_69, %c0_70, %c0_71] : memref<3x32x8xf32, #tpu.memory_space<vmem>>, vector<1x32x8xf32>
    %60 = vector.shape_cast %59 : vector<1x32x8xf32> to vector<32x8xf32>
    %c0_72 = arith.constant 0 : index
    %c2_73 = arith.constant 2 : index
    %61 = vector.load %arg13[%c0_72, %c2_73] : memref<8x18xf32, #tpu.memory_space<vmem>>, vector<8x16xf32>
    %cst_74 = arith.constant dense<0.000000e+00> : vector<32x16xf32>
    %62 = tpu.matmul %60, %61, %cst_74 {dimension_numbers = #tpu.dot_dimension_numbers<[1], [0], [0], [1], [0, 0, 1, 1], [], []>} : vector<32x8xf32>, vector<8x16xf32>, vector<32x16xf32> -> vector<32x16xf32>
    %63 = arith.addf %58, %62 : vector<32x16xf32>
    %cst_75 = arith.constant 0.000000e+00 : f32
    %64 = vector.broadcast %cst_75 : f32 to vector<32x16xf32>
    %65 = arith.maximumf %63, %64 : vector<32x16xf32>
    %cst_76 = arith.constant 0.000000e+00 : f32
    %66 = vector.broadcast %cst_76 : f32 to vector<32x18xf32>
    %c0_77 = arith.constant 0 : index
    %c0_78 = arith.constant 0 : index
    %67 = vector.load %arg14[%c0_77, %c0_78] : memref<32x18xf32, #tpu.memory_space<vmem>>, vector<32x18xf32>
    tpu.vector_store %arg14[%c0_77, %c0_78], %66 {strides = array<i32>} : memref<32x18xf32, #tpu.memory_space<vmem>>, vector<32x18xf32>,
    %c0_79 = arith.constant 0 : index
    %c1_80 = arith.constant 1 : index
    %68 = vector.load %arg14[%c0_79, %c1_80] : memref<32x18xf32, #tpu.memory_space<vmem>>, vector<32x16xf32>
    tpu.vector_store %arg14[%c0_79, %c1_80], %65 {strides = array<i32>} : memref<32x18xf32, #tpu.memory_space<vmem>>, vector<32x16xf32>,
    %c0_81 = arith.constant 0 : index
    %c0_82 = arith.constant 0 : index
    %69 = vector.load %arg9[%c0_81, %c0_82] : memref<4x1xf32, #tpu.memory_space<vmem>>, vector<4x1xf32>
    %c0_83 = arith.constant 0 : index
    %c0_84 = arith.constant 0 : index
    %c0_85 = arith.constant 0 : index
    %70 = vector.load %arg8[%c0_83, %c0_84, %c0_85] : memref<3x4x32xf32, #tpu.memory_space<vmem>>, vector<1x4x32xf32>
    %71 = vector.shape_cast %70 : vector<1x4x32xf32> to vector<4x32xf32>
    %c0_86 = arith.constant 0 : index
    %c0_87 = arith.constant 0 : index
    %72 = vector.load %arg14[%c0_86, %c0_87] : memref<32x18xf32, #tpu.memory_space<vmem>>, vector<32x16xf32>
    %cst_88 = arith.constant dense<0.000000e+00> : vector<4x16xf32>
    %73 = tpu.matmul %71, %72, %cst_88 {dimension_numbers = #tpu.dot_dimension_numbers<[1], [0], [0], [1], [0, 0, 1, 1], [], []>} : vector<4x32xf32>, vector<32x16xf32>, vector<4x16xf32> -> vector<4x16xf32>
    %74 = vector.broadcast %69 : vector<4x1xf32> to vector<4x16xf32>
    %75 = arith.addf %74, %73 : vector<4x16xf32>
    %c1_89 = arith.constant 1 : index
    %c0_90 = arith.constant 0 : index
    %c0_91 = arith.constant 0 : index
    %76 = vector.load %arg8[%c1_89, %c0_90, %c0_91] : memref<3x4x32xf32, #tpu.memory_space<vmem>>, vector<1x4x32xf32>
    %77 = vector.shape_cast %76 : vector<1x4x32xf32> to vector<4x32xf32>
    %c0_92 = arith.constant 0 : index
    %c1_93 = arith.constant 1 : index
    %78 = vector.load %arg14[%c0_92, %c1_93] : memref<32x18xf32, #tpu.memory_space<vmem>>, vector<32x16xf32>
    %cst_94 = arith.constant dense<0.000000e+00> : vector<4x16xf32>
    %79 = tpu.matmul %77, %78, %cst_94 {dimension_numbers = #tpu.dot_dimension_numbers<[1], [0], [0], [1], [0, 0, 1, 1], [], []>} : vector<4x32xf32>, vector<32x16xf32>, vector<4x16xf32> -> vector<4x16xf32>
    %80 = arith.addf %75, %79 : vector<4x16xf32>
    %c2_95 = arith.constant 2 : index
    %c0_96 = arith.constant 0 : index
    %c0_97 = arith.constant 0 : index
    %81 = vector.load %arg8[%c2_95, %c0_96, %c0_97] : memref<3x4x32xf32, #tpu.memory_space<vmem>>, vector<1x4x32xf32>
    %82 = vector.shape_cast %81 : vector<1x4x32xf32> to vector<4x32xf32>
    %c0_98 = arith.constant 0 : index
    %c2_99 = arith.constant 2 : index
    %83 = vector.load %arg14[%c0_98, %c2_99] : memref<32x18xf32, #tpu.memory_space<vmem>>, vector<32x16xf32>
    %cst_100 = arith.constant dense<0.000000e+00> : vector<4x16xf32>
    %84 = tpu.matmul %82, %83, %cst_100 {dimension_numbers = #tpu.dot_dimension_numbers<[1], [0], [0], [1], [0, 0, 1, 1], [], []>} : vector<4x32xf32>, vector<32x16xf32>, vector<4x16xf32> -> vector<4x16xf32>
    %85 = arith.addf %80, %84 : vector<4x16xf32>
    %c0_101 = arith.constant 0 : index
    %c0_102 = arith.constant 0 : index
    %c0_103 = arith.constant 0 : index
    %86 = vector.load %arg10[%c0_101, %c0_102, %c0_103] : memref<1x4x16xf32, #tpu.memory_space<vmem>>, vector<1x4x16xf32>
    %87 = vector.shape_cast %86 : vector<1x4x16xf32> to vector<4x16xf32>
    %88 = vector.shape_cast %85 : vector<4x16xf32> to vector<1x4x16xf32>
    tpu.vector_store %arg10[%c0_101, %c0_102, %c0_103], %88 {strides = array<i32>} : memref<1x4x16xf32, #tpu.memory_space<vmem>>, vector<1x4x16xf32>,
    return
  }
  func.func @transform_0(%arg0: i32) -> (i32, i32, i32) {
    %c0_i32 = arith.constant 0 : i32
    %c0_i32_0 = arith.constant 0 : i32
    %c0_i32_1 = arith.constant 0 : i32
    return %arg0, %c0_i32, %c0_i32_0 : i32, i32, i32
  }
  func.func @transform_1(%arg0: i32) -> (i32, i32, i32) {
    %c0_i32 = arith.constant 0 : i32
    %c0_i32_0 = arith.constant 0 : i32
    %c0_i32_1 = arith.constant 0 : i32
    %c0_i32_2 = arith.constant 0 : i32
    return %c0_i32, %c0_i32_0, %c0_i32_1 : i32, i32, i32
  }
  func.func @transform_2(%arg0: i32) -> (i32, i32) {
    %c0_i32 = arith.constant 0 : i32
    %c0_i32_0 = arith.constant 0 : i32
    %c0_i32_1 = arith.constant 0 : i32
    return %c0_i32, %c0_i32_0 : i32, i32
  }
  func.func @transform_3(%arg0: i32) -> (i32, i32, i32) {
    %c0_i32 = arith.constant 0 : i32
    %c0_i32_0 = arith.constant 0 : i32
    %c0_i32_1 = arith.constant 0 : i32
    %c0_i32_2 = arith.constant 0 : i32
    return %c0_i32, %c0_i32_0, %c0_i32_1 : i32, i32, i32
  }
  func.func @transform_4(%arg0: i32) -> (i32, i32) {
    %c0_i32 = arith.constant 0 : i32
    %c0_i32_0 = arith.constant 0 : i32
    %c0_i32_1 = arith.constant 0 : i32
    return %c0_i32, %c0_i32_0 : i32, i32
  }
  func.func @transform_5(%arg0: i32) -> (i32, i32, i32) {
    %c0_i32 = arith.constant 0 : i32
    %c0_i32_0 = arith.constant 0 : i32
    %c0_i32_1 = arith.constant 0 : i32
    %c0_i32_2 = arith.constant 0 : i32
    return %c0_i32, %c0_i32_0, %c0_i32_1 : i32, i32, i32
  }
  func.func @transform_6(%arg0: i32) -> (i32, i32) {
    %c0_i32 = arith.constant 0 : i32
    %c0_i32_0 = arith.constant 0 : i32
    %c0_i32_1 = arith.constant 0 : i32
    return %c0_i32, %c0_i32_0 : i32, i32
  }
  func.func @transform_7(%arg0: i32) -> (i32, i32, i32) {
    %c0_i32 = arith.constant 0 : i32
    %c0_i32_0 = arith.constant 0 : i32
    %c0_i32_1 = arith.constant 0 : i32
    %c0_i32_2 = arith.constant 0 : i32
    return %c0_i32, %c0_i32_0, %c0_i32_1 : i32, i32, i32
  }
  func.func @transform_8(%arg0: i32) -> (i32, i32) {
    %c0_i32 = arith.constant 0 : i32
    %c0_i32_0 = arith.constant 0 : i32
    %c0_i32_1 = arith.constant 0 : i32
    return %c0_i32, %c0_i32_0 : i32, i32
  }
  func.func @transform_9(%arg0: i32) -> (i32, i32, i32) {
    %c0_i32 = arith.constant 0 : i32
    %c0_i32_0 = arith.constant 0 : i32
    %c0_i32_1 = arith.constant 0 : i32
    return %arg0, %c0_i32, %c0_i32_0 : i32, i32, i32
  }
}

</mosaic_0001>

<llo_original>
// kernel: autoencoder_forward.1
$region0: #{autoencoder_forward.1}
  #allocation0 [shape = 'u32[]', space=smem, size = 0x4, offset = 0x4, fixed_abs, tag = 'smem constant byte address 0x4 - core index']
  #allocation1 [shape = 'u32[144,128]{1,0:T(1,128)}', space=vmem, size = 0x12000, scoped, tag = 'internal scratch']
  #allocation2 [shape = 'f32[4,18]{1,0:T(4,128)}', space=vmem, size = 0x800, scoped, tag = 'scratch operand']
  #allocation3 [shape = 'f32[32,18]{1,0:T(8,128)}', space=vmem, size = 0x4000, scoped, tag = 'scratch operand']
  #allocation4 [shape = 'f32[8,18]{1,0:T(8,128)}', space=vmem, size = 0x1000, scoped, tag = 'scratch operand']
  #allocation5 [shape = 'f32[32,18]{1,0:T(8,128)}', space=vmem, size = 0x4000, scoped, tag = 'scratch operand']
  %s0 = inlined_call_operand.vmem [shape: f32[2,4,16], index: 0, kind: input, shape index: {}]
  %s1 = inlined_call_operand.vmem [shape: f32[3,32,4], index: 1, kind: input, shape index: {}]
  %s2 = inlined_call_operand.vmem [shape: f32[32,1], index: 2, kind: input, shape index: {}]
  %s3 = inlined_call_operand.vmem [shape: f32[3,8,32], index: 3, kind: input, shape index: {}]
  %s4 = inlined_call_operand.vmem [shape: f32[8,1], index: 4, kind: input, shape index: {}]
  %s5 = inlined_call_operand.vmem [shape: f32[3,32,8], index: 5, kind: input, shape index: {}]
  %s6 = inlined_call_operand.vmem [shape: f32[32,1], index: 6, kind: input, shape index: {}]
  %s7 = inlined_call_operand.vmem [shape: f32[3,4,32], index: 7, kind: input, shape index: {}]
  %s8 = inlined_call_operand.vmem [shape: f32[4,1], index: 8, kind: input, shape index: {}]
  %s9 = inlined_call_operand.hbm [shape: f32[2,4,16], index: 9, kind: output, shape index: {}]
  %s10 = sld [smem:[#allocation0]]
  $region69: #{autoencoder_forward.1} parent=0
    _
  %s12 = ssub.s32 1, %s10
  %s13 = scalar_select 0, %s12, %s10
  $region1: #{autoencoder_forward.1} parent=0
    #allocation6 [shape = 'u8[4096]{0}', space=vmem, size = 0x1000, scoped, tag = 'output window, operand 0']
    #allocation7 [shape = 's32[2]{0}', space=sflag, size = 0x8, scoped, tag = 'scoped memory for autoencoder_forward.1']
    %14 = vsyncpa [#allocation7], 0
    %s15 = scalar_lea.sflag [#allocation7], 1
    %16 = vsyncpa %s15, 0
    loop: start=0, step=1, limit=4
    $region2: #{autoencoder_forward.1} parent=1 // loop_pre_header
      _
    $region3: #{autoencoder_forward.1} parent=1 // loop_header
      %s18 = sphi 0, %s22
      %p19 = scmp.ge.s32.totalorder %s18, 4
      %s28 = sphi 0, %s30
      %s31 = sphi 0, %s28
      %s32 = sphi 0, %s31
      %s48 = sphi 0, %s32
      %s52 = sphi 0, %s52
      %s54 = sphi 0, %s52
      %s55 = sphi 0, %s54
      %s69 = sphi 0, %s55
      %s73 = sphi 0, %s73
      %s75 = sphi 0, %s73
      %s76 = sphi 0, %s75
      %s90 = sphi 0, %s76
      %s94 = sphi 0, %s94
      %s96 = sphi 0, %s94
      %s97 = sphi 0, %s96
      %s111 = sphi 0, %s97
      %s115 = sphi 0, %s115
      %s117 = sphi 0, %s115
      %s118 = sphi 0, %s117
      %s132 = sphi 0, %s118
      %s136 = sphi 0, %s136
      %s138 = sphi 0, %s136
      %s139 = sphi 0, %s138
      %s153 = sphi 0, %s139
      %s157 = sphi 0, %s157
      %s159 = sphi 0, %s157
      %s160 = sphi 0, %s159
      %s174 = sphi 0, %s160
      %s178 = sphi 0, %s178
      %s180 = sphi 0, %s178
      %s181 = sphi 0, %s180
      %s195 = sphi 0, %s181
      %s199 = sphi 0, %s199
      %s201 = sphi 0, %s199
      %s202 = sphi 0, %s201
      %s216 = sphi 0, %s202
      %s222 = sphi 0, %s224
      %s225 = sphi 0, %s222
      %s226 = sphi 0, %s225
      %s242 = sphi 0, %s226
    $region4: #{autoencoder_forward.1} parent=1 // loop_header_branch
      %21 = sbr.rel (%p19) target = $region8
    $region5: #{autoencoder_forward.1} parent=1 // loop_body
      %s23 = ssub.s32 %s18, 1
      %s24 = ssub.s32 %s18, 2
      %s25 = sadd.s32 %s18, 1
      %s26 = ssub.s32 %s18, %s25
      %p27 = scmp.eq.s32.totalorder %s26, 0
      %s29 = sadd.s32 %s28, 1
      %s30 = scalar_select %p27, %s28, %s29
      %p33 = pneg %p27
      %p34 = scmp.eq.s32.totalorder %s18, 1
      %p35 = por %p33, %p34
      %p36 = scmp.ne.s32.totalorder %s28, %s31
      %p37 = scmp.eq.s32.totalorder %s18, 0
      %p38 = por %p36, %p37
      %p39 = scmp.ne.s32.totalorder %s28, %s31
      %p40 = scmp.eq.s32.totalorder %s23, 1
      %p41 = por %p39, %p40
      %p42 = scmp.ne.s32.totalorder %s31, %s32
      %p43 = scmp.eq.s32.totalorder %s23, 0
      %p44 = por %p42, %p43
      %p45 = scmp.ne.s32.totalorder %s31, %s32
      %p46 = scmp.eq.s32.totalorder %s24, 1
      %p47 = por %p45, %p46
      %p49 = scmp.ne.s32.totalorder %s32, %s48
      %p50 = scmp.eq.s32.totalorder %s24, 0
      %p51 = por %p49, %p50
      %s53 = sadd.s32 %s52, 1
      %p56 = scmp.eq.s32.totalorder %s18, 1
      %p57 = scmp.ne.s32.totalorder %s52, %s54
      %p58 = scmp.eq.s32.totalorder %s18, 0
      %p59 = por %p57, %p58
      %p60 = scmp.ne.s32.totalorder %s52, %s54
      %p61 = scmp.eq.s32.totalorder %s23, 1
      %p62 = por %p60, %p61
      %p63 = scmp.ne.s32.totalorder %s54, %s55
      %p64 = scmp.eq.s32.totalorder %s23, 0
      %p65 = por %p63, %p64
      %p66 = scmp.ne.s32.totalorder %s54, %s55
      %p67 = scmp.eq.s32.totalorder %s24, 1
      %p68 = por %p66, %p67
      %p70 = scmp.ne.s32.totalorder %s55, %s69
      %p71 = scmp.eq.s32.totalorder %s24, 0
      %p72 = por %p70, %p71
      %s74 = sadd.s32 %s73, 1
      %p77 = scmp.eq.s32.totalorder %s18, 1
      %p78 = scmp.ne.s32.totalorder %s73, %s75
      %p79 = scmp.eq.s32.totalorder %s18, 0
      %p80 = por %p78, %p79
      %p81 = scmp.ne.s32.totalorder %s73, %s75
      %p82 = scmp.eq.s32.totalorder %s23, 1
      %p83 = por %p81, %p82
      %p84 = scmp.ne.s32.totalorder %s75, %s76
      %p85 = scmp.eq.s32.totalorder %s23, 0
      %p86 = por %p84, %p85
      %p87 = scmp.ne.s32.totalorder %s75, %s76
      %p88 = scmp.eq.s32.totalorder %s24, 1
      %p89 = por %p87, %p88
      %p91 = scmp.ne.s32.totalorder %s76, %s90
      %p92 = scmp.eq.s32.totalorder %s24, 0
      %p93 = por %p91, %p92
      %s95 = sadd.s32 %s94, 1
      %p98 = scmp.eq.s32.totalorder %s18, 1
      %p99 = scmp.ne.s32.totalorder %s94, %s96
      %p100 = scmp.eq.s32.totalorder %s18, 0
      %p101 = por %p99, %p100
      %p102 = scmp.ne.s32.totalorder %s94, %s96
      %p103 = scmp.eq.s32.totalorder %s23, 1
      %p104 = por %p102, %p103
      %p105 = scmp.ne.s32.totalorder %s96, %s97
      %p106 = scmp.eq.s32.totalorder %s23, 0
      %p107 = por %p105, %p106
      %p108 = scmp.ne.s32.totalorder %s96, %s97
      %p109 = scmp.eq.s32.totalorder %s24, 1
      %p110 = por %p108, %p109
      %p112 = scmp.ne.s32.totalorder %s97, %s111
      %p113 = scmp.eq.s32.totalorder %s24, 0
      %p114 = por %p112, %p113
      %s116 = sadd.s32 %s115, 1
      %p119 = scmp.eq.s32.totalorder %s18, 1
      %p120 = scmp.ne.s32.totalorder %s115, %s117
      %p121 = scmp.eq.s32.totalorder %s18, 0
      %p122 = por %p120, %p121
      %p123 = scmp.ne.s32.totalorder %s115, %s117
      %p124 = scmp.eq.s32.totalorder %s23, 1
      %p125 = por %p123, %p124
      %p126 = scmp.ne.s32.totalorder %s117, %s118
      %p127 = scmp.eq.s32.totalorder %s23, 0
      %p128 = por %p126, %p127
      %p129 = scmp.ne.s32.totalorder %s117, %s118
      %p130 = scmp.eq.s32.totalorder %s24, 1
      %p131 = por %p129, %p130
      %p133 = scmp.ne.s32.totalorder %s118, %s132
      %p134 = scmp.eq.s32.totalorder %s24, 0
      %p135 = por %p133, %p134
      %s137 = sadd.s32 %s136, 1
      %p140 = scmp.eq.s32.totalorder %s18, 1
      %p141 = scmp.ne.s32.totalorder %s136, %s138
      %p142 = scmp.eq.s32.totalorder %s18, 0
      %p143 = por %p141, %p142
      %p144 = scmp.ne.s32.totalorder %s136, %s138
      %p145 = scmp.eq.s32.totalorder %s23, 1
      %p146 = por %p144, %p145
      %p147 = scmp.ne.s32.totalorder %s138, %s139
      %p148 = scmp.eq.s32.totalorder %s23, 0
      %p149 = por %p147, %p148
      %p150 = scmp.ne.s32.totalorder %s138, %s139
      %p151 = scmp.eq.s32.totalorder %s24, 1
      %p152 = por %p150, %p151
      %p154 = scmp.ne.s32.totalorder %s139, %s153
      %p155 = scmp.eq.s32.totalorder %s24, 0
      %p156 = por %p154, %p155
      %s158 = sadd.s32 %s157, 1
      %p161 = scmp.eq.s32.totalorder %s18, 1
      %p162 = scmp.ne.s32.totalorder %s157, %s159
      %p163 = scmp.eq.s32.totalorder %s18, 0
      %p164 = por %p162, %p163
      %p165 = scmp.ne.s32.totalorder %s157, %s159
      %p166 = scmp.eq.s32.totalorder %s23, 1
      %p167 = por %p165, %p166
      %p168 = scmp.ne.s32.totalorder %s159, %s160
      %p169 = scmp.eq.s32.totalorder %s23, 0
      %p170 = por %p168, %p169
      %p171 = scmp.ne.s32.totalorder %s159, %s160
      %p172 = scmp.eq.s32.totalorder %s24, 1
      %p173 = por %p171, %p172
      %p175 = scmp.ne.s32.totalorder %s160, %s174
      %p176 = scmp.eq.s32.totalorder %s24, 0
      %p177 = por %p175, %p176
      %s179 = sadd.s32 %s178, 1
      %p182 = scmp.eq.s32.totalorder %s18, 1
      %p183 = scmp.ne.s32.totalorder %s178, %s180
      %p184 = scmp.eq.s32.totalorder %s18, 0
      %p185 = por %p183, %p184
      %p186 = scmp.ne.s32.totalorder %s178, %s180
      %p187 = scmp.eq.s32.totalorder %s23, 1
      %p188 = por %p186, %p187
      %p189 = scmp.ne.s32.totalorder %s180, %s181
      %p190 = scmp.eq.s32.totalorder %s23, 0
      %p191 = por %p189, %p190
      %p192 = scmp.ne.s32.totalorder %s180, %s181
      %p193 = scmp.eq.s32.totalorder %s24, 1
      %p194 = por %p192, %p193
      %p196 = scmp.ne.s32.totalorder %s181, %s195
      %p197 = scmp.eq.s32.totalorder %s24, 0
      %p198 = por %p196, %p197
      %s200 = sadd.s32 %s199, 1
      %p203 = scmp.eq.s32.totalorder %s18, 1
      %p204 = scmp.ne.s32.totalorder %s199, %s201
      %p205 = scmp.eq.s32.totalorder %s18, 0
      %p206 = por %p204, %p205
      %p207 = scmp.ne.s32.totalorder %s199, %s201
      %p208 = scmp.eq.s32.totalorder %s23, 1
      %p209 = por %p207, %p208
      %p210 = scmp.ne.s32.totalorder %s201, %s202
      %p211 = scmp.eq.s32.totalorder %s23, 0
      %p212 = por %p210, %p211
      %p213 = scmp.ne.s32.totalorder %s201, %s202
      %p214 = scmp.eq.s32.totalorder %s24, 1
      %p215 = por %p213, %p214
      %p217 = scmp.ne.s32.totalorder %s202, %s216
      %p218 = scmp.eq.s32.totalorder %s24, 0
      %p219 = por %p217, %p218
      %s220 = ssub.s32 %s18, %s25
      %p221 = scmp.eq.s32.totalorder %s220, 0
      %s223 = sadd.s32 %s222, 1
      %s224 = scalar_select %p221, %s222, %s223
      %p227 = pneg %p221
      %p228 = scmp.eq.s32.totalorder %s18, 1
      %p229 = por %p227, %p228
      %p230 = scmp.ne.s32.totalorder %s222, %s225
      %p231 = scmp.eq.s32.totalorder %s18, 0
      %p232 = por %p230, %p231
      %p233 = scmp.ne.s32.totalorder %s222, %s225
      %p234 = scmp.eq.s32.totalorder %s23, 1
      %p235 = por %p233, %p234
      %p236 = scmp.ne.s32.totalorder %s225, %s226
      %p237 = scmp.eq.s32.totalorder %s23, 0
      %p238 = por %p236, %p237
      %p239 = scmp.ne.s32.totalorder %s225, %s226
      %p240 = scmp.eq.s32.totalorder %s24, 1
      %p241 = por %p239, %p240
      %p243 = scmp.ne.s32.totalorder %s226, %s242
      %p244 = scmp.eq.s32.totalorder %s24, 0
      %p245 = por %p243, %p244
      %p246 = scmp.le.s32.totalorder 1, %s18
      %p247 = scmp.lt.s32.totalorder %s18, 3
      %p248 = pnand %p246, %p247
      %p249 = pneg %p248
      // Predicated region
      $region9: #{autoencoder_forward.1} parent=5 // pred_check
        _
      $region10: #{autoencoder_forward.1} parent=5 // pred_check_branch
        %251 = sbr.rel (%p248) target = $region12
      $region11: #{autoencoder_forward.1} parent=5 // pred_region
        %s252 = ssub.s32 %s18, 1
        // Predicated region
        $region13: #{autoencoder_forward.1} parent=11 // pred_check
          %p253 = pneg %p65
        $region14: #{autoencoder_forward.1} parent=11 // pred_check_branch
          %255 = sbr.rel (%p253) target = $region16
        $region15: #{autoencoder_forward.1} parent=11 // pred_region
          _
        $region16: #{autoencoder_forward.1} parent=11 // pred_fallthru
          _
        // Predicated region
        $region17: #{autoencoder_forward.1} parent=11 // pred_check
          %p256 = pneg %p86
        $region18: #{autoencoder_forward.1} parent=11 // pred_check_branch
          %258 = sbr.rel (%p256) target = $region20
        $region19: #{autoencoder_forward.1} parent=11 // pred_region
          _
        $region20: #{autoencoder_forward.1} parent=11 // pred_fallthru
          _
        // Predicated region
        $region21: #{autoencoder_forward.1} parent=11 // pred_check
          %p259 = pneg %p107
        $region22: #{autoencoder_forward.1} parent=11 // pred_check_branch
          %261 = sbr.rel (%p259) target = $region24
        $region23: #{autoencoder_forward.1} parent=11 // pred_region
          _
        $region24: #{autoencoder_forward.1} parent=11 // pred_fallthru
          _
        // Predicated region
        $region25: #{autoencoder_forward.1} parent=11 // pred_check
          %p262 = pneg %p128
        $region26: #{autoencoder_forward.1} parent=11 // pred_check_branch
          %264 = sbr.rel (%p262) target = $region28
        $region27: #{autoencoder_forward.1} parent=11 // pred_region
          _
        $region28: #{autoencoder_forward.1} parent=11 // pred_fallthru
          _
        // Predicated region
        $region29: #{autoencoder_forward.1} parent=11 // pred_check
          %p265 = pneg %p149
        $region30: #{autoencoder_forward.1} parent=11 // pred_check_branch
          %267 = sbr.rel (%p265) target = $region32
        $region31: #{autoencoder_forward.1} parent=11 // pred_region
          _
        $region32: #{autoencoder_forward.1} parent=11 // pred_fallthru
          _
        // Predicated region
        $region33: #{autoencoder_forward.1} parent=11 // pred_check
          %p268 = pneg %p170
        $region34: #{autoencoder_forward.1} parent=11 // pred_check_branch
          %270 = sbr.rel (%p268) target = $region36
        $region35: #{autoencoder_forward.1} parent=11 // pred_region
          _
        $region36: #{autoencoder_forward.1} parent=11 // pred_fallthru
          _
        // Predicated region
        $region37: #{autoencoder_forward.1} parent=11 // pred_check
          %p271 = pneg %p191
        $region38: #{autoencoder_forward.1} parent=11 // pred_check_branch
          %273 = sbr.rel (%p271) target = $region40
        $region39: #{autoencoder_forward.1} parent=11 // pred_region
          _
        $region40: #{autoencoder_forward.1} parent=11 // pred_fallthru
          _
        // Predicated region
        $region41: #{autoencoder_forward.1} parent=11 // pred_check
          %p274 = pneg %p212
        $region42: #{autoencoder_forward.1} parent=11 // pred_check_branch
          %276 = sbr.rel (%p274) target = $region44
        $region43: #{autoencoder_forward.1} parent=11 // pred_region
          _
        $region44: #{autoencoder_forward.1} parent=11 // pred_fallthru
          _
      $region12: #{autoencoder_forward.1} parent=5 // pred_fallthru
        _
      %p277 = scmp.lt.s32.totalorder %s18, 2
      // Predicated region
      $region45: #{autoencoder_forward.1} parent=5 // pred_check
        %p278 = pneg %p277
      $region46: #{autoencoder_forward.1} parent=5 // pred_check_branch
        %280 = sbr.rel (%p278) target = $region48
      $region47: #{autoencoder_forward.1} parent=5 // pred_region
        // Predicated region
        $region49: #{autoencoder_forward.1} parent=47 // pred_check
          %p281 = pneg %p38
        $region50: #{autoencoder_forward.1} parent=47 // pred_check_branch
          %283 = sbr.rel (%p281) target = $region52
        $region51: #{autoencoder_forward.1} parent=47 // pred_region
          %p284 = scmp.lt.s32.totalorder %s18, 1
          %s285 = scalar_select %p284, %s18, 1
          %s286 = smul.addr %s285, 4
          %s287 = scalar_lea.vmem %s0, %s286
        $region52: #{autoencoder_forward.1} parent=47 // pred_fallthru
          _
      $region48: #{autoencoder_forward.1} parent=5 // pred_fallthru
        _
      %p288 = scmp.le.s32.totalorder 1, %s18
      %p289 = scmp.lt.s32.totalorder %s18, 3
      %p290 = pnand %p288, %p289
      %p291 = pneg %p290
      // Predicated region
      $region53: #{autoencoder_forward.1} parent=5 // pred_check
        _
      $region54: #{autoencoder_forward.1} parent=5 // pred_check_branch
        %293 = sbr.rel (%p290) target = $region56
      $region55: #{autoencoder_forward.1} parent=5 // pred_region
        %s294 = ssub.s32 %s18, 1
        %p295 = scmp.lt.s32.totalorder %s23, 1
        %s296 = scalar_select %p295, %s23, 1
        %s297 = smul.addr %s296, 4
        %s298 = scalar_lea.vmem %s0, %s297
        %p299 = pneg %p44
        %p300 = pneg %p41
        %p301 = pneg %p65
        %p302 = pneg %p62
        %p303 = pneg %p86
        %p304 = pneg %p83
        %p305 = pneg %p107
        %p306 = pneg %p104
        %p307 = pneg %p128
        %p308 = pneg %p125
        %p309 = pneg %p149
        %p310 = pneg %p146
        %p311 = pneg %p170
        %p312 = pneg %p167
        %p313 = pneg %p191
        %p314 = pneg %p188
        %p315 = pneg %p212
        %p316 = pneg %p209
        %p317 = pneg %p238
        %p318 = pneg %p235
        %s319 = sand.u32 %s225, 1
        %s320 = scalar_lea.sflag [#allocation7], %s319
        %s321 = sand.u32 %s225, 1
        %s322 = smul.addr %s321, 4
        %s323 = scalar_lea.vmem [#allocation6], %s322
        %p324 = scmp.lt.s32.totalorder %s23, 1
        %s325 = scalar_select %p324, %s23, 1
        %s326 = smul.addr %s325, 4
        %s327 = scalar_lea.vmem %s0, %s326
        %v328 = vld [vmem:[%s327] sm:$0xf]
        %vm329 = vcmask 142336
        %330 = vst.msk [vmem:[#allocation2] sm:$0xf] %vm329, 0.0
        %332 = vrot.lane.b32.xlu0 %v328, 1
        %v333 = vpop.permute.xlu0 %332
        %vm335 = vcmask 134152
        %336 = vst.msk [vmem:[#allocation2] sm:$0xf] %vm335, %v333
        %v337 = vld [vmem:[%s2] sm:$0xff]
        %v338 = vld [vmem:[%s2 + $0x8] sm:$0xff]
        %v339 = vld [vmem:[%s2 + $0x10] sm:$0xff]
        %v340 = vld [vmem:[%s2 + $0x18] sm:$0xff]
        %v341 = vld [vmem:[%s1] sm:$0xff]
        %v342 = vld [vmem:[%s1 + $0x8] sm:$0xff]
        %v343 = vld [vmem:[%s1 + $0x10] sm:$0xff]
        %v344 = vld [vmem:[%s1 + $0x18] sm:$0xff]
        %v345 = vld [vmem:[#allocation2] sm:$0xf]
        %vm346 = vcmask 31744
        %v348 = vsel %vm346, %v341, 0
        %v351 = vsel %vm346, %v342, 0
        %v354 = vsel %vm346, %v343, 0
        %v357 = vsel %vm346, %v344, 0
        %vm359 = vcmask 1043456
        %v361 = vsel %vm359, %v345, 0
        %363 = vmatprep.subr.mxu0 0.0
        %364 = vmatpush1.msra.mxu0 %v361
        %365 = vmatprep.subr.mxu0 0.0
        %366 = vmatpush1.msra.mxu0 0.0
        %367 = vmatprep.subr.mxu0 0.0
        %368 = vmatpush1.msra.mxu0 0.0
        %369 = vmatprep.subr.mxu0 0.0
        %370 = vmatpush1.msra.mxu0 0.0
        %371 = vmatprep.subr.mxu0 0.0
        %372 = vmatpush1.msra.mxu0 0.0
        %373 = vmatprep.subr.mxu0 0.0
        %374 = vmatpush1.msra.mxu0 0.0
        %375 = vmatprep.subr.mxu0 0.0
        %376 = vmatpush1.msra.mxu0 0.0
        %377 = vmatprep.subr.mxu0 0.0
        %378 = vmatpush1.msra.mxu0 0.0
        %379 = vmatprep.subr.mxu0 0.0
        %380 = vmatpush1.msra.mxu0 0.0
        %381 = vmatprep.subr.mxu0 0.0
        %382 = vmatpush1.msra.mxu0 0.0
        %383 = vmatprep.subr.mxu0 0.0
        %384 = vmatpush1.msra.mxu0 0.0
        %385 = vmatprep.subr.mxu0 0.0
        %386 = vmatpush1.msra.mxu0 0.0
        %387 = vmatprep.subr.mxu0 0.0
        %388 = vmatpush1.msra.mxu0 0.0
        %389 = vmatprep.subr.mxu0 0.0
        %390 = vmatpush1.msra.mxu0 0.0
        %391 = vmatprep.subr.mxu0 0.0
        %392 = vmatpush1.msra.mxu0 0.0
        %393 = vmatprep.subr.mxu0 0.0
        %394 = vmatpush1.msra.mxu0 0.0
        %395 = vmatprep.subr.mxu0 0.0
        %396 = vmatpush1.msra.mxu0 0.0
        %397 = vmatprep.subr.mxu0 0.0
        %398 = vmatpush1.msra.mxu0 0.0
        %399 = vmatprep.subr.mxu0 0.0
        %400 = vmatpush1.msra.mxu0 0.0
        %401 = vmatprep.subr.mxu0 0.0
        %402 = vmatpush1.msra.mxu0 0.0
        %403 = vmatprep.subr.mxu0 0.0
        %404 = vmatpush1.msra.mxu0 0.0
        %405 = vmatprep.subr.mxu0 0.0
        %406 = vmatpush1.msra.mxu0 0.0
        %407 = vmatprep.subr.mxu0 0.0
        %408 = vmatpush1.msra.mxu0 0.0
        %409 = vmatprep.subr.mxu0 0.0
        %410 = vmatpush1.msra.mxu0 0.0
        %411 = vmatprep.subr.mxu0 0.0
        %412 = vmatpush1.msra.mxu0 0.0
        %413 = vmatprep.subr.mxu0 0.0
        %414 = vmatpush1.msra.mxu0 0.0
        %415 = vmatprep.subr.mxu0 0.0
        %416 = vmatpush1.msra.mxu0 0.0
        %417 = vmatprep.subr.mxu0 0.0
        %418 = vmatpush1.msra.mxu0 0.0
        %419 = vmatprep.subr.mxu0 0.0
        %420 = vmatpush1.msra.mxu0 0.0
        %421 = vmatprep.subr.mxu0 0.0
        %422 = vmatpush1.msra.mxu0 0.0
        %423 = vmatprep.subr.mxu0 0.0
        %424 = vmatpush1.msra.mxu0 0.0
        %425 = vmatprep.subr.mxu0 0.0
        %426 = vmatpush1.msra.mxu0 0.0
        %427 = vmatprep.mubr.f32.mxu0 0.0
        %428 = vmatmul.mubr.f32.gmra.mrb[0].mxu0 %v348
        %v429 = vpop.f32.mrb[0].mxu0
        %v430 = vadd.f32 0.0, %v429
        %v431 = vpop.f32.mrb[0].mxu0
        %432 = vmatprep.mubr.f32.mxu0 0.0
        %433 = vmatmul.mubr.f32.gmra.mrb[0].mxu0 %v351
        %v434 = vpop.f32.mrb[0].mxu0
        %v435 = vadd.f32 0.0, %v434
        %v436 = vpop.f32.mrb[0].mxu0
        %437 = vmatprep.mubr.f32.mxu0 0.0
        %438 = vmatmul.mubr.f32.gmra.mrb[0].mxu0 %v354
        %v439 = vpop.f32.mrb[0].mxu0
        %v440 = vadd.f32 0.0, %v439
        %v441 = vpop.f32.mrb[0].mxu0
        %442 = vmatprep.mubr.f32.mxu0 0.0
        %443 = vmatmul.mubr.f32.gmra.mrb[0].mxu0 %v357
        %v444 = vpop.f32.mrb[0].mxu0
        %v445 = vadd.f32 0.0, %v444
        %v446 = vpop.f32.mrb[0].mxu0
        %447 = vdwg.mxu0
        %449 = vset.pattern.permute.xlu0 0
        %450 = vperm.xlu0 %449, %v337
        %v451 = vpop.permute.xlu0 %450
        %454 = vset.pattern.permute.xlu0 0
        %455 = vperm.xlu0 %454, %v338
        %v456 = vpop.permute.xlu0 %455
        %459 = vset.pattern.permute.xlu0 0
        %460 = vperm.xlu0 %459, %v339
        %v461 = vpop.permute.xlu0 %460
        %464 = vset.pattern.permute.xlu0 0
        %465 = vperm.xlu0 %464, %v340
        %v466 = vpop.permute.xlu0 %465
        %v468 = vadd.f32 %v451, %v430
        %v469 = vadd.f32 %v456, %v435
        %v470 = vadd.f32 %v461, %v440
        %v471 = vadd.f32 %v466, %v445
        %s472 = scalar_lea.vmem %s1, 32
        %v473 = vld [vmem:[%s472] sm:$0xff]
        %v474 = vld [vmem:[%s472 + $0x8] sm:$0xff]
        %v475 = vld [vmem:[%s472 + $0x10] sm:$0xff]
        %v476 = vld [vmem:[%s472 + $0x18] sm:$0xff]
        %477 = vrot.lane.b32.xlu0 %v345, 127
        %v478 = vpop.permute.xlu0 %477
        %v480 = vsel %vm346, %v473, 0
        %v483 = vsel %vm346, %v474, 0
        %v486 = vsel %vm346, %v475, 0
        %v489 = vsel %vm346, %v476, 0
        %v491 = vsel %vm359, %v478, 0
        %493 = vmatprep.subr.mxu0 0.0
        %494 = vmatpush1.msra.mxu0 %v491
        %495 = vmatprep.subr.mxu0 0.0
        %496 = vmatpush1.msra.mxu0 0.0
        %497 = vmatprep.subr.mxu0 0.0
        %498 = vmatpush1.msra.mxu0 0.0
        %499 = vmatprep.subr.mxu0 0.0
        %500 = vmatpush1.msra.mxu0 0.0
        %501 = vmatprep.subr.mxu0 0.0
        %502 = vmatpush1.msra.mxu0 0.0
        %503 = vmatprep.subr.mxu0 0.0
        %504 = vmatpush1.msra.mxu0 0.0
        %505 = vmatprep.subr.mxu0 0.0
        %506 = vmatpush1.msra.mxu0 0.0
        %507 = vmatprep.subr.mxu0 0.0
        %508 = vmatpush1.msra.mxu0 0.0
        %509 = vmatprep.subr.mxu0 0.0
        %510 = vmatpush1.msra.mxu0 0.0
        %511 = vmatprep.subr.mxu0 0.0
        %512 = vmatpush1.msra.mxu0 0.0
        %513 = vmatprep.subr.mxu0 0.0
        %514 = vmatpush1.msra.mxu0 0.0
        %515 = vmatprep.subr.mxu0 0.0
        %516 = vmatpush1.msra.mxu0 0.0
        %517 = vmatprep.subr.mxu0 0.0
        %518 = vmatpush1.msra.mxu0 0.0
        %519 = vmatprep.subr.mxu0 0.0
        %520 = vmatpush1.msra.mxu0 0.0
        %521 = vmatprep.subr.mxu0 0.0
        %522 = vmatpush1.msra.mxu0 0.0
        %523 = vmatprep.subr.mxu0 0.0
        %524 = vmatpush1.msra.mxu0 0.0
        %525 = vmatprep.subr.mxu0 0.0
        %526 = vmatpush1.msra.mxu0 0.0
        %527 = vmatprep.subr.mxu0 0.0
        %528 = vmatpush1.msra.mxu0 0.0
        %529 = vmatprep.subr.mxu0 0.0
        %530 = vmatpush1.msra.mxu0 0.0
        %531 = vmatprep.subr.mxu0 0.0
        %532 = vmatpush1.msra.mxu0 0.0
        %533 = vmatprep.subr.mxu0 0.0
        %534 = vmatpush1.msra.mxu0 0.0
        %535 = vmatprep.subr.mxu0 0.0
        %536 = vmatpush1.msra.mxu0 0.0
        %537 = vmatprep.subr.mxu0 0.0
        %538 = vmatpush1.msra.mxu0 0.0
        %539 = vmatprep.subr.mxu0 0.0
        %540 = vmatpush1.msra.mxu0 0.0
        %541 = vmatprep.subr.mxu0 0.0
        %542 = vmatpush1.msra.mxu0 0.0
        %543 = vmatprep.subr.mxu0 0.0
        %544 = vmatpush1.msra.mxu0 0.0
        %545 = vmatprep.subr.mxu0 0.0
        %546 = vmatpush1.msra.mxu0 0.0
        %547 = vmatprep.subr.mxu0 0.0
        %548 = vmatpush1.msra.mxu0 0.0
        %549 = vmatprep.subr.mxu0 0.0
        %550 = vmatpush1.msra.mxu0 0.0
        %551 = vmatprep.subr.mxu0 0.0
        %552 = vmatpush1.msra.mxu0 0.0
        %553 = vmatprep.subr.mxu0 0.0
        %554 = vmatpush1.msra.mxu0 0.0
        %555 = vmatprep.subr.mxu0 0.0
        %556 = vmatpush1.msra.mxu0 0.0
        %557 = vmatprep.mubr.f32.mxu0 0.0
        %558 = vmatmul.mubr.f32.gmra.mrb[0].mxu0 %v480
        %v559 = vpop.f32.mrb[0].mxu0
        %v560 = vadd.f32 0.0, %v559
        %v561 = vpop.f32.mrb[0].mxu0
        %562 = vmatprep.mubr.f32.mxu0 0.0
        %563 = vmatmul.mubr.f32.gmra.mrb[0].mxu0 %v483
        %v564 = vpop.f32.mrb[0].mxu0
        %v565 = vadd.f32 0.0, %v564
        %v566 = vpop.f32.mrb[0].mxu0
        %567 = vmatprep.mubr.f32.mxu0 0.0
        %568 = vmatmul.mubr.f32.gmra.mrb[0].mxu0 %v486
        %v569 = vpop.f32.mrb[0].mxu0
        %v570 = vadd.f32 0.0, %v569
        %v571 = vpop.f32.mrb[0].mxu0
        %572 = vmatprep.mubr.f32.mxu0 0.0
        %573 = vmatmul.mubr.f32.gmra.mrb[0].mxu0 %v489
        %v574 = vpop.f32.mrb[0].mxu0
        %v575 = vadd.f32 0.0, %v574
        %v576 = vpop.f32.mrb[0].mxu0
        %577 = vdwg.mxu0
        %v578 = vadd.f32 %v468, %v560
        %v579 = vadd.f32 %v469, %v565
        %v580 = vadd.f32 %v470, %v570
        %v581 = vadd.f32 %v471, %v575
        %s582 = scalar_lea.vmem %s1, 64
        %v583 = vld [vmem:[%s582] sm:$0xff]
        %v584 = vld [vmem:[%s582 + $0x8] sm:$0xff]
        %v585 = vld [vmem:[%s582 + $0x10] sm:$0xff]
        %v586 = vld [vmem:[%s582 + $0x18] sm:$0xff]
        %587 = vrot.lane.b32.xlu0 %v345, 126
        %v588 = vpop.permute.xlu0 %587
        %v590 = vsel %vm346, %v583, 0
        %v593 = vsel %vm346, %v584, 0
        %v596 = vsel %vm346, %v585, 0
        %v599 = vsel %vm346, %v586, 0
        %v601 = vsel %vm359, %v588, 0
        %603 = vmatprep.subr.mxu0 0.0
        %604 = vmatpush1.msra.mxu0 %v601
        %605 = vmatprep.subr.mxu0 0.0
        %606 = vmatpush1.msra.mxu0 0.0
        %607 = vmatprep.subr.mxu0 0.0
        %608 = vmatpush1.msra.mxu0 0.0
        %609 = vmatprep.subr.mxu0 0.0
        %610 = vmatpush1.msra.mxu0 0.0
        %611 = vmatprep.subr.mxu0 0.0
        %612 = vmatpush1.msra.mxu0 0.0
        %613 = vmatprep.subr.mxu0 0.0
        %614 = vmatpush1.msra.mxu0 0.0
        %615 = vmatprep.subr.mxu0 0.0
        %616 = vmatpush1.msra.mxu0 0.0
        %617 = vmatprep.subr.mxu0 0.0
        %618 = vmatpush1.msra.mxu0 0.0
        %619 = vmatprep.subr.mxu0 0.0
        %620 = vmatpush1.msra.mxu0 0.0
        %621 = vmatprep.subr.mxu0 0.0
        %622 = vmatpush1.msra.mxu0 0.0
        %623 = vmatprep.subr.mxu0 0.0
        %624 = vmatpush1.msra.mxu0 0.0
        %625 = vmatprep.subr.mxu0 0.0
        %626 = vmatpush1.msra.mxu0 0.0
        %627 = vmatprep.subr.mxu0 0.0
        %628 = vmatpush1.msra.mxu0 0.0
        %629 = vmatprep.subr.mxu0 0.0
        %630 = vmatpush1.msra.mxu0 0.0
        %631 = vmatprep.subr.mxu0 0.0
        %632 = vmatpush1.msra.mxu0 0.0
        %633 = vmatprep.subr.mxu0 0.0
        %634 = vmatpush1.msra.mxu0 0.0
        %635 = vmatprep.subr.mxu0 0.0
        %636 = vmatpush1.msra.mxu0 0.0
        %637 = vmatprep.subr.mxu0 0.0
        %638 = vmatpush1.msra.mxu0 0.0
        %639 = vmatprep.subr.mxu0 0.0
        %640 = vmatpush1.msra.mxu0 0.0
        %641 = vmatprep.subr.mxu0 0.0
        %642 = vmatpush1.msra.mxu0 0.0
        %643 = vmatprep.subr.mxu0 0.0
        %644 = vmatpush1.msra.mxu0 0.0
        %645 = vmatprep.subr.mxu0 0.0
        %646 = vmatpush1.msra.mxu0 0.0
        %647 = vmatprep.subr.mxu0 0.0
        %648 = vmatpush1.msra.mxu0 0.0
        %649 = vmatprep.subr.mxu0 0.0
        %650 = vmatpush1.msra.mxu0 0.0
        %651 = vmatprep.subr.mxu0 0.0
        %652 = vmatpush1.msra.mxu0 0.0
        %653 = vmatprep.subr.mxu0 0.0
        %654 = vmatpush1.msra.mxu0 0.0
        %655 = vmatprep.subr.mxu0 0.0
        %656 = vmatpush1.msra.mxu0 0.0
        %657 = vmatprep.subr.mxu0 0.0
        %658 = vmatpush1.msra.mxu0 0.0
        %659 = vmatprep.subr.mxu0 0.0
        %660 = vmatpush1.msra.mxu0 0.0
        %661 = vmatprep.subr.mxu0 0.0
        %662 = vmatpush1.msra.mxu0 0.0
        %663 = vmatprep.subr.mxu0 0.0
        %664 = vmatpush1.msra.mxu0 0.0
        %665 = vmatprep.subr.mxu0 0.0
        %666 = vmatpush1.msra.mxu0 0.0
        %667 = vmatprep.mubr.f32.mxu0 0.0
        %668 = vmatmul.mubr.f32.gmra.mrb[0].mxu0 %v590
        %v669 = vpop.f32.mrb[0].mxu0
        %v670 = vadd.f32 0.0, %v669
        %v671 = vpop.f32.mrb[0].mxu0
        %672 = vmatprep.mubr.f32.mxu0 0.0
        %673 = vmatmul.mubr.f32.gmra.mrb[0].mxu0 %v593
        %v674 = vpop.f32.mrb[0].mxu0
        %v675 = vadd.f32 0.0, %v674
        %v676 = vpop.f32.mrb[0].mxu0
        %677 = vmatprep.mubr.f32.mxu0 0.0
        %678 = vmatmul.mubr.f32.gmra.mrb[0].mxu0 %v596
        %v679 = vpop.f32.mrb[0].mxu0
        %v680 = vadd.f32 0.0, %v679
        %v681 = vpop.f32.mrb[0].mxu0
        %682 = vmatprep.mubr.f32.mxu0 0.0
        %683 = vmatmul.mubr.f32.gmra.mrb[0].mxu0 %v599
        %v684 = vpop.f32.mrb[0].mxu0
        %v685 = vadd.f32 0.0, %v684
        %v686 = vpop.f32.mrb[0].mxu0
        %687 = vdwg.mxu0
        %v688 = vadd.f32 %v578, %v670
        %v689 = vadd.f32 %v579, %v675
        %v690 = vadd.f32 %v580, %v680
        %v691 = vadd.f32 %v581, %v685
        %v692 = vmax.f32 %v688, 0.0
        %v693 = vmax.f32 %v689, 0.0
        %v694 = vmax.f32 %v690, 0.0
        %v695 = vmax.f32 %v691, 0.0
        %vm696 = vcmask 146432
        %697 = vst.msk [vmem:[#allocation3] sm:$0xff] %vm696, 0.0
        %698 = vst.msk [vmem:[#allocation3 + $0x8] sm:$0xff] %vm696, 0.0
        %699 = vst.msk [vmem:[#allocation3 + $0x10] sm:$0xff] %vm696, 0.0
        %700 = vst.msk [vmem:[#allocation3 + $0x18] sm:$0xff] %vm696, 0.0
        %705 = vrot.lane.b32.xlu0 %v692, 1
        %v706 = vpop.permute.xlu0 %705
        %707 = vrot.lane.b32.xlu0 %v693, 1
        %v708 = vpop.permute.xlu0 %707
        %709 = vrot.lane.b32.xlu0 %v694, 1
        %v710 = vpop.permute.xlu0 %709
        %711 = vrot.lane.b32.xlu0 %v695, 1
        %v712 = vpop.permute.xlu0 %711
        %vm717 = vcmask 138248
        %718 = vst.msk [vmem:[#allocation3] sm:$0xff] %vm717, %v706
        %719 = vst.msk [vmem:[#allocation3 + $0x8] sm:$0xff] %vm717, %v708
        %720 = vst.msk [vmem:[#allocation3 + $0x10] sm:$0xff] %vm717, %v710
        %721 = vst.msk [vmem:[#allocation3 + $0x18] sm:$0xff] %vm717, %v712
        %v722 = vld [vmem:[%s4] sm:$0xff]
        %v723 = vld [vmem:[%s3] sm:$0xff]
        %v724 = vld [vmem:[#allocation3] sm:$0xff]
        %v725 = vld [vmem:[#allocation3 + $0x8] sm:$0xff]
        %v726 = vld [vmem:[#allocation3 + $0x10] sm:$0xff]
        %v727 = vld [vmem:[#allocation3 + $0x18] sm:$0xff]
        %vm728 = vcmask 261120
        %v730 = vsel %vm728, %v723, 0
        %732 = vmatprep.subr.mxu0 0.0
        %733 = vmatpush1.msra.mxu0 %v724
        %734 = vmatprep.subr.mxu0 0.0
        %735 = vmatpush1.msra.mxu0 %v725
        %736 = vmatprep.subr.mxu0 0.0
        %737 = vmatpush1.msra.mxu0 %v726
        %738 = vmatprep.subr.mxu0 0.0
        %739 = vmatpush1.msra.mxu0 %v727
        %740 = vmatprep.subr.mxu0 0.0
        %741 = vmatpush1.msra.mxu0 0.0
        %742 = vmatprep.subr.mxu0 0.0
        %743 = vmatpush1.msra.mxu0 0.0
        %744 = vmatprep.subr.mxu0 0.0
        %745 = vmatpush1.msra.mxu0 0.0
        %746 = vmatprep.subr.mxu0 0.0
        %747 = vmatpush1.msra.mxu0 0.0
        %748 = vmatprep.subr.mxu0 0.0
        %749 = vmatpush1.msra.mxu0 0.0
        %750 = vmatprep.subr.mxu0 0.0
        %751 = vmatpush1.msra.mxu0 0.0
        %752 = vmatprep.subr.mxu0 0.0
        %753 = vmatpush1.msra.mxu0 0.0
        %754 = vmatprep.subr.mxu0 0.0
        %755 = vmatpush1.msra.mxu0 0.0
        %756 = vmatprep.subr.mxu0 0.0
        %757 = vmatpush1.msra.mxu0 0.0
        %758 = vmatprep.subr.mxu0 0.0
        %759 = vmatpush1.msra.mxu0 0.0
        %760 = vmatprep.subr.mxu0 0.0
        %761 = vmatpush1.msra.mxu0 0.0
        %762 = vmatprep.subr.mxu0 0.0
        %763 = vmatpush1.msra.mxu0 0.0
        %764 = vmatprep.subr.mxu0 0.0
        %765 = vmatpush1.msra.mxu0 0.0
        %766 = vmatprep.subr.mxu0 0.0
        %767 = vmatpush1.msra.mxu0 0.0
        %768 = vmatprep.subr.mxu0 0.0
        %769 = vmatpush1.msra.mxu0 0.0
        %770 = vmatprep.subr.mxu0 0.0
        %771 = vmatpush1.msra.mxu0 0.0
        %772 = vmatprep.subr.mxu0 0.0
        %773 = vmatpush1.msra.mxu0 0.0
        %774 = vmatprep.subr.mxu0 0.0
        %775 = vmatpush1.msra.mxu0 0.0
        %776 = vmatprep.subr.mxu0 0.0
        %777 = vmatpush1.msra.mxu0 0.0
        %778 = vmatprep.subr.mxu0 0.0
        %779 = vmatpush1.msra.mxu0 0.0
        %780 = vmatprep.subr.mxu0 0.0
        %781 = vmatpush1.msra.mxu0 0.0
        %782 = vmatprep.subr.mxu0 0.0
        %783 = vmatpush1.msra.mxu0 0.0
        %784 = vmatprep.subr.mxu0 0.0
        %785 = vmatpush1.msra.mxu0 0.0
        %786 = vmatprep.subr.mxu0 0.0
        %787 = vmatpush1.msra.mxu0 0.0
        %788 = vmatprep.subr.mxu0 0.0
        %789 = vmatpush1.msra.mxu0 0.0
        %790 = vmatprep.subr.mxu0 0.0
        %791 = vmatpush1.msra.mxu0 0.0
        %792 = vmatprep.subr.mxu0 0.0
        %793 = vmatpush1.msra.mxu0 0.0
        %794 = vmatprep.subr.mxu0 0.0
        %795 = vmatpush1.msra.mxu0 0.0
        %796 = vmatprep.mubr.f32.mxu0 0.0
        %797 = vmatmul.mubr.f32.gmra.mrb[0].mxu0 %v730
        %v798 = vpop.f32.mrb[0].mxu0
        %v799 = vadd.f32 0.0, %v798
        %v800 = vpop.f32.mrb[0].mxu0
        %801 = vdwg.mxu0
        %803 = vset.pattern.permute.xlu0 0
        %804 = vperm.xlu0 %803, %v722
        %v805 = vpop.permute.xlu0 %804
        %v807 = vadd.f32 %v805, %v799
        %s808 = scalar_lea.vmem %s3, 8
        %v809 = vld [vmem:[%s808] sm:$0xff]
        %814 = vrot.lane.b32.xlu0 %v724, 127
        %v815 = vpop.permute.xlu0 %814
        %816 = vrot.lane.b32.xlu0 %v725, 127
        %v817 = vpop.permute.xlu0 %816
        %818 = vrot.lane.b32.xlu0 %v726, 127
        %v819 = vpop.permute.xlu0 %818
        %820 = vrot.lane.b32.xlu0 %v727, 127
        %v821 = vpop.permute.xlu0 %820
        %v827 = vsel %vm728, %v809, 0
        %829 = vmatprep.subr.mxu0 0.0
        %830 = vmatpush1.msra.mxu0 %v815
        %831 = vmatprep.subr.mxu0 0.0
        %832 = vmatpush1.msra.mxu0 %v817
        %833 = vmatprep.subr.mxu0 0.0
        %834 = vmatpush1.msra.mxu0 %v819
        %835 = vmatprep.subr.mxu0 0.0
        %836 = vmatpush1.msra.mxu0 %v821
        %837 = vmatprep.subr.mxu0 0.0
        %838 = vmatpush1.msra.mxu0 0.0
        %839 = vmatprep.subr.mxu0 0.0
        %840 = vmatpush1.msra.mxu0 0.0
        %841 = vmatprep.subr.mxu0 0.0
        %842 = vmatpush1.msra.mxu0 0.0
        %843 = vmatprep.subr.mxu0 0.0
        %844 = vmatpush1.msra.mxu0 0.0
        %845 = vmatprep.subr.mxu0 0.0
        %846 = vmatpush1.msra.mxu0 0.0
        %847 = vmatprep.subr.mxu0 0.0
        %848 = vmatpush1.msra.mxu0 0.0
        %849 = vmatprep.subr.mxu0 0.0
        %850 = vmatpush1.msra.mxu0 0.0
        %851 = vmatprep.subr.mxu0 0.0
        %852 = vmatpush1.msra.mxu0 0.0
        %853 = vmatprep.subr.mxu0 0.0
        %854 = vmatpush1.msra.mxu0 0.0
        %855 = vmatprep.subr.mxu0 0.0
        %856 = vmatpush1.msra.mxu0 0.0
        %857 = vmatprep.subr.mxu0 0.0
        %858 = vmatpush1.msra.mxu0 0.0
        %859 = vmatprep.subr.mxu0 0.0
        %860 = vmatpush1.msra.mxu0 0.0
        %861 = vmatprep.subr.mxu0 0.0
        %862 = vmatpush1.msra.mxu0 0.0
        %863 = vmatprep.subr.mxu0 0.0
        %864 = vmatpush1.msra.mxu0 0.0
        %865 = vmatprep.subr.mxu0 0.0
        %866 = vmatpush1.msra.mxu0 0.0
        %867 = vmatprep.subr.mxu0 0.0
        %868 = vmatpush1.msra.mxu0 0.0
        %869 = vmatprep.subr.mxu0 0.0
        %870 = vmatpush1.msra.mxu0 0.0
        %871 = vmatprep.subr.mxu0 0.0
        %872 = vmatpush1.msra.mxu0 0.0
        %873 = vmatprep.subr.mxu0 0.0
        %874 = vmatpush1.msra.mxu0 0.0
        %875 = vmatprep.subr.mxu0 0.0
        %876 = vmatpush1.msra.mxu0 0.0
        %877 = vmatprep.subr.mxu0 0.0
        %878 = vmatpush1.msra.mxu0 0.0
        %879 = vmatprep.subr.mxu0 0.0
        %880 = vmatpush1.msra.mxu0 0.0
        %881 = vmatprep.subr.mxu0 0.0
        %882 = vmatpush1.msra.mxu0 0.0
        %883 = vmatprep.subr.mxu0 0.0
        %884 = vmatpush1.msra.mxu0 0.0
        %885 = vmatprep.subr.mxu0 0.0
        %886 = vmatpush1.msra.mxu0 0.0
        %887 = vmatprep.subr.mxu0 0.0
        %888 = vmatpush1.msra.mxu0 0.0
        %889 = vmatprep.subr.mxu0 0.0
        %890 = vmatpush1.msra.mxu0 0.0
        %891 = vmatprep.subr.mxu0 0.0
        %892 = vmatpush1.msra.mxu0 0.0
        %893 = vmatprep.mubr.f32.mxu0 0.0
        %894 = vmatmul.mubr.f32.gmra.mrb[0].mxu0 %v827
        %v895 = vpop.f32.mrb[0].mxu0
        %v896 = vadd.f32 0.0, %v895
        %v897 = vpop.f32.mrb[0].mxu0
        %898 = vdwg.mxu0
        %v899 = vadd.f32 %v807, %v896
        %s900 = scalar_lea.vmem %s3, 16
        %v901 = vld [vmem:[%s900] sm:$0xff]
        %902 = vrot.lane.b32.xlu0 %v724, 126
        %v903 = vpop.permute.xlu0 %902
        %904 = vrot.lane.b32.xlu0 %v725, 126
        %v905 = vpop.permute.xlu0 %904
        %906 = vrot.lane.b32.xlu0 %v726, 126
        %v907 = vpop.permute.xlu0 %906
        %908 = vrot.lane.b32.xlu0 %v727, 126
        %v909 = vpop.permute.xlu0 %908
        %v915 = vsel %vm728, %v901, 0
        %917 = vmatprep.subr.mxu0 0.0
        %918 = vmatpush1.msra.mxu0 %v903
        %919 = vmatprep.subr.mxu0 0.0
        %920 = vmatpush1.msra.mxu0 %v905
        %921 = vmatprep.subr.mxu0 0.0
        %922 = vmatpush1.msra.mxu0 %v907
        %923 = vmatprep.subr.mxu0 0.0
        %924 = vmatpush1.msra.mxu0 %v909
        %925 = vmatprep.subr.mxu0 0.0
        %926 = vmatpush1.msra.mxu0 0.0
        %927 = vmatprep.subr.mxu0 0.0
        %928 = vmatpush1.msra.mxu0 0.0
        %929 = vmatprep.subr.mxu0 0.0
        %930 = vmatpush1.msra.mxu0 0.0
        %931 = vmatprep.subr.mxu0 0.0
        %932 = vmatpush1.msra.mxu0 0.0
        %933 = vmatprep.subr.mxu0 0.0
        %934 = vmatpush1.msra.mxu0 0.0
        %935 = vmatprep.subr.mxu0 0.0
        %936 = vmatpush1.msra.mxu0 0.0
        %937 = vmatprep.subr.mxu0 0.0
        %938 = vmatpush1.msra.mxu0 0.0
        %939 = vmatprep.subr.mxu0 0.0
        %940 = vmatpush1.msra.mxu0 0.0
        %941 = vmatprep.subr.mxu0 0.0
        %942 = vmatpush1.msra.mxu0 0.0
        %943 = vmatprep.subr.mxu0 0.0
        %944 = vmatpush1.msra.mxu0 0.0
        %945 = vmatprep.subr.mxu0 0.0
        %946 = vmatpush1.msra.mxu0 0.0
        %947 = vmatprep.subr.mxu0 0.0
        %948 = vmatpush1.msra.mxu0 0.0
        %949 = vmatprep.subr.mxu0 0.0
        %950 = vmatpush1.msra.mxu0 0.0
        %951 = vmatprep.subr.mxu0 0.0
        %952 = vmatpush1.msra.mxu0 0.0
        %953 = vmatprep.subr.mxu0 0.0
        %954 = vmatpush1.msra.mxu0 0.0
        %955 = vmatprep.subr.mxu0 0.0
        %956 = vmatpush1.msra.mxu0 0.0
        %957 = vmatprep.subr.mxu0 0.0
        %958 = vmatpush1.msra.mxu0 0.0
        %959 = vmatprep.subr.mxu0 0.0
        %960 = vmatpush1.msra.mxu0 0.0
        %961 = vmatprep.subr.mxu0 0.0
        %962 = vmatpush1.msra.mxu0 0.0
        %963 = vmatprep.subr.mxu0 0.0
        %964 = vmatpush1.msra.mxu0 0.0
        %965 = vmatprep.subr.mxu0 0.0
        %966 = vmatpush1.msra.mxu0 0.0
        %967 = vmatprep.subr.mxu0 0.0
        %968 = vmatpush1.msra.mxu0 0.0
        %969 = vmatprep.subr.mxu0 0.0
        %970 = vmatpush1.msra.mxu0 0.0
        %971 = vmatprep.subr.mxu0 0.0
        %972 = vmatpush1.msra.mxu0 0.0
        %973 = vmatprep.subr.mxu0 0.0
        %974 = vmatpush1.msra.mxu0 0.0
        %975 = vmatprep.subr.mxu0 0.0
        %976 = vmatpush1.msra.mxu0 0.0
        %977 = vmatprep.subr.mxu0 0.0
        %978 = vmatpush1.msra.mxu0 0.0
        %979 = vmatprep.subr.mxu0 0.0
        %980 = vmatpush1.msra.mxu0 0.0
        %981 = vmatprep.mubr.f32.mxu0 0.0
        %982 = vmatmul.mubr.f32.gmra.mrb[0].mxu0 %v915
        %v983 = vpop.f32.mrb[0].mxu0
        %v984 = vadd.f32 0.0, %v983
        %v985 = vpop.f32.mrb[0].mxu0
        %986 = vdwg.mxu0
        %v987 = vadd.f32 %v899, %v984
        %988 = vst.msk [vmem:[#allocation4] sm:$0xff] %vm696, 0.0
        %990 = vrot.lane.b32.xlu0 %v987, 1
        %v991 = vpop.permute.xlu0 %990
        %993 = vst.msk [vmem:[#allocation4] sm:$0xff] %vm717, %v991
        %v994 = vld [vmem:[%s6] sm:$0xff]
        %v995 = vld [vmem:[%s6 + $0x8] sm:$0xff]
        %v996 = vld [vmem:[%s6 + $0x10] sm:$0xff]
        %v997 = vld [vmem:[%s6 + $0x18] sm:$0xff]
        %v998 = vld [vmem:[%s5] sm:$0xff]
        %v999 = vld [vmem:[%s5 + $0x8] sm:$0xff]
        %v1000 = vld [vmem:[%s5 + $0x10] sm:$0xff]
        %v1001 = vld [vmem:[%s5 + $0x18] sm:$0xff]
        %v1002 = vld [vmem:[#allocation4] sm:$0xff]
        %vm1003 = vcmask 64512
        %v1005 = vsel %vm1003, %v998, 0
        %v1008 = vsel %vm1003, %v999, 0
        %v1011 = vsel %vm1003, %v1000, 0
        %v1014 = vsel %vm1003, %v1001, 0
        %1016 = vmatprep.subr.mxu0 0.0
        %1017 = vmatpush1.msra.mxu0 %v1002
        %1018 = vmatprep.subr.mxu0 0.0
        %1019 = vmatpush1.msra.mxu0 0.0
        %1020 = vmatprep.subr.mxu0 0.0
        %1021 = vmatpush1.msra.mxu0 0.0
        %1022 = vmatprep.subr.mxu0 0.0
        %1023 = vmatpush1.msra.mxu0 0.0
        %1024 = vmatprep.subr.mxu0 0.0
        %1025 = vmatpush1.msra.mxu0 0.0
        %1026 = vmatprep.subr.mxu0 0.0
        %1027 = vmatpush1.msra.mxu0 0.0
        %1028 = vmatprep.subr.mxu0 0.0
        %1029 = vmatpush1.msra.mxu0 0.0
        %1030 = vmatprep.subr.mxu0 0.0
        %1031 = vmatpush1.msra.mxu0 0.0
        %1032 = vmatprep.subr.mxu0 0.0
        %1033 = vmatpush1.msra.mxu0 0.0
        %1034 = vmatprep.subr.mxu0 0.0
        %1035 = vmatpush1.msra.mxu0 0.0
        %1036 = vmatprep.subr.mxu0 0.0
        %1037 = vmatpush1.msra.mxu0 0.0
        %1038 = vmatprep.subr.mxu0 0.0
        %1039 = vmatpush1.msra.mxu0 0.0
        %1040 = vmatprep.subr.mxu0 0.0
        %1041 = vmatpush1.msra.mxu0 0.0
        %1042 = vmatprep.subr.mxu0 0.0
        %1043 = vmatpush1.msra.mxu0 0.0
        %1044 = vmatprep.subr.mxu0 0.0
        %1045 = vmatpush1.msra.mxu0 0.0
        %1046 = vmatprep.subr.mxu0 0.0
        %1047 = vmatpush1.msra.mxu0 0.0
        %1048 = vmatprep.subr.mxu0 0.0
        %1049 = vmatpush1.msra.mxu0 0.0
        %1050 = vmatprep.subr.mxu0 0.0
        %1051 = vmatpush1.msra.mxu0 0.0
        %1052 = vmatprep.subr.mxu0 0.0
        %1053 = vmatpush1.msra.mxu0 0.0
        %1054 = vmatprep.subr.mxu0 0.0
        %1055 = vmatpush1.msra.mxu0 0.0
        %1056 = vmatprep.subr.mxu0 0.0
        %1057 = vmatpush1.msra.mxu0 0.0
        %1058 = vmatprep.subr.mxu0 0.0
        %1059 = vmatpush1.msra.mxu0 0.0
        %1060 = vmatprep.subr.mxu0 0.0
        %1061 = vmatpush1.msra.mxu0 0.0
        %1062 = vmatprep.subr.mxu0 0.0
        %1063 = vmatpush1.msra.mxu0 0.0
        %1064 = vmatprep.subr.mxu0 0.0
        %1065 = vmatpush1.msra.mxu0 0.0
        %1066 = vmatprep.subr.mxu0 0.0
        %1067 = vmatpush1.msra.mxu0 0.0
        %1068 = vmatprep.subr.mxu0 0.0
        %1069 = vmatpush1.msra.mxu0 0.0
        %1070 = vmatprep.subr.mxu0 0.0
        %1071 = vmatpush1.msra.mxu0 0.0
        %1072 = vmatprep.subr.mxu0 0.0
        %1073 = vmatpush1.msra.mxu0 0.0
        %1074 = vmatprep.subr.mxu0 0.0
        %1075 = vmatpush1.msra.mxu0 0.0
        %1076 = vmatprep.subr.mxu0 0.0
        %1077 = vmatpush1.msra.mxu0 0.0
        %1078 = vmatprep.subr.mxu0 0.0
        %1079 = vmatpush1.msra.mxu0 0.0
        %1080 = vmatprep.mubr.f32.mxu0 0.0
        %1081 = vmatmul.mubr.f32.gmra.mrb[0].mxu0 %v1005
        %v1082 = vpop.f32.mrb[0].mxu0
        %v1083 = vadd.f32 0.0, %v1082
        %v1084 = vpop.f32.mrb[0].mxu0
        %1085 = vmatprep.mubr.f32.mxu0 0.0
        %1086 = vmatmul.mubr.f32.gmra.mrb[0].mxu0 %v1008
        %v1087 = vpop.f32.mrb[0].mxu0
        %v1088 = vadd.f32 0.0, %v1087
        %v1089 = vpop.f32.mrb[0].mxu0
        %1090 = vmatprep.mubr.f32.mxu0 0.0
        %1091 = vmatmul.mubr.f32.gmra.mrb[0].mxu0 %v1011
        %v1092 = vpop.f32.mrb[0].mxu0
        %v1093 = vadd.f32 0.0, %v1092
        %v1094 = vpop.f32.mrb[0].mxu0
        %1095 = vmatprep.mubr.f32.mxu0 0.0
        %1096 = vmatmul.mubr.f32.gmra.mrb[0].mxu0 %v1014
        %v1097 = vpop.f32.mrb[0].mxu0
        %v1098 = vadd.f32 0.0, %v1097
        %v1099 = vpop.f32.mrb[0].mxu0
        %1100 = vdwg.mxu0
        %1102 = vset.pattern.permute.xlu0 0
        %1103 = vperm.xlu0 %1102, %v994
        %v1104 = vpop.permute.xlu0 %1103
        %1107 = vset.pattern.permute.xlu0 0
        %1108 = vperm.xlu0 %1107, %v995
        %v1109 = vpop.permute.xlu0 %1108
        %1112 = vset.pattern.permute.xlu0 0
        %1113 = vperm.xlu0 %1112, %v996
        %v1114 = vpop.permute.xlu0 %1113
        %1117 = vset.pattern.permute.xlu0 0
        %1118 = vperm.xlu0 %1117, %v997
        %v1119 = vpop.permute.xlu0 %1118
        %v1121 = vadd.f32 %v1104, %v1083
        %v1122 = vadd.f32 %v1109, %v1088
        %v1123 = vadd.f32 %v1114, %v1093
        %v1124 = vadd.f32 %v1119, %v1098
        %s1125 = scalar_lea.vmem %s5, 32
        %v1126 = vld [vmem:[%s1125] sm:$0xff]
        %v1127 = vld [vmem:[%s1125 + $0x8] sm:$0xff]
        %v1128 = vld [vmem:[%s1125 + $0x10] sm:$0xff]
        %v1129 = vld [vmem:[%s1125 + $0x18] sm:$0xff]
        %1131 = vrot.lane.b32.xlu0 %v1002, 127
        %v1132 = vpop.permute.xlu0 %1131
        %v1135 = vsel %vm1003, %v1126, 0
        %v1138 = vsel %vm1003, %v1127, 0
        %v1141 = vsel %vm1003, %v1128, 0
        %v1144 = vsel %vm1003, %v1129, 0
        %1146 = vmatprep.subr.mxu0 0.0
        %1147 = vmatpush1.msra.mxu0 %v1132
        %1148 = vmatprep.subr.mxu0 0.0
        %1149 = vmatpush1.msra.mxu0 0.0
        %1150 = vmatprep.subr.mxu0 0.0
        %1151 = vmatpush1.msra.mxu0 0.0
        %1152 = vmatprep.subr.mxu0 0.0
        %1153 = vmatpush1.msra.mxu0 0.0
        %1154 = vmatprep.subr.mxu0 0.0
        %1155 = vmatpush1.msra.mxu0 0.0
        %1156 = vmatprep.subr.mxu0 0.0
        %1157 = vmatpush1.msra.mxu0 0.0
        %1158 = vmatprep.subr.mxu0 0.0
        %1159 = vmatpush1.msra.mxu0 0.0
        %1160 = vmatprep.subr.mxu0 0.0
        %1161 = vmatpush1.msra.mxu0 0.0
        %1162 = vmatprep.subr.mxu0 0.0
        %1163 = vmatpush1.msra.mxu0 0.0
        %1164 = vmatprep.subr.mxu0 0.0
        %1165 = vmatpush1.msra.mxu0 0.0
        %1166 = vmatprep.subr.mxu0 0.0
        %1167 = vmatpush1.msra.mxu0 0.0
        %1168 = vmatprep.subr.mxu0 0.0
        %1169 = vmatpush1.msra.mxu0 0.0
        %1170 = vmatprep.subr.mxu0 0.0
        %1171 = vmatpush1.msra.mxu0 0.0
        %1172 = vmatprep.subr.mxu0 0.0
        %1173 = vmatpush1.msra.mxu0 0.0
        %1174 = vmatprep.subr.mxu0 0.0
        %1175 = vmatpush1.msra.mxu0 0.0
        %1176 = vmatprep.subr.mxu0 0.0
        %1177 = vmatpush1.msra.mxu0 0.0
        %1178 = vmatprep.subr.mxu0 0.0
        %1179 = vmatpush1.msra.mxu0 0.0
        %1180 = vmatprep.subr.mxu0 0.0
        %1181 = vmatpush1.msra.mxu0 0.0
        %1182 = vmatprep.subr.mxu0 0.0
        %1183 = vmatpush1.msra.mxu0 0.0
        %1184 = vmatprep.subr.mxu0 0.0
        %1185 = vmatpush1.msra.mxu0 0.0
        %1186 = vmatprep.subr.mxu0 0.0
        %1187 = vmatpush1.msra.mxu0 0.0
        %1188 = vmatprep.subr.mxu0 0.0
        %1189 = vmatpush1.msra.mxu0 0.0
        %1190 = vmatprep.subr.mxu0 0.0
        %1191 = vmatpush1.msra.mxu0 0.0
        %1192 = vmatprep.subr.mxu0 0.0
        %1193 = vmatpush1.msra.mxu0 0.0
        %1194 = vmatprep.subr.mxu0 0.0
        %1195 = vmatpush1.msra.mxu0 0.0
        %1196 = vmatprep.subr.mxu0 0.0
        %1197 = vmatpush1.msra.mxu0 0.0
        %1198 = vmatprep.subr.mxu0 0.0
        %1199 = vmatpush1.msra.mxu0 0.0
        %1200 = vmatprep.subr.mxu0 0.0
        %1201 = vmatpush1.msra.mxu0 0.0
        %1202 = vmatprep.subr.mxu0 0.0
        %1203 = vmatpush1.msra.mxu0 0.0
        %1204 = vmatprep.subr.mxu0 0.0
        %1205 = vmatpush1.msra.mxu0 0.0
        %1206 = vmatprep.subr.mxu0 0.0
        %1207 = vmatpush1.msra.mxu0 0.0
        %1208 = vmatprep.subr.mxu0 0.0
        %1209 = vmatpush1.msra.mxu0 0.0
        %1210 = vmatprep.mubr.f32.mxu0 0.0
        %1211 = vmatmul.mubr.f32.gmra.mrb[0].mxu0 %v1135
        %v1212 = vpop.f32.mrb[0].mxu0
        %v1213 = vadd.f32 0.0, %v1212
        %v1214 = vpop.f32.mrb[0].mxu0
        %1215 = vmatprep.mubr.f32.mxu0 0.0
        %1216 = vmatmul.mubr.f32.gmra.mrb[0].mxu0 %v1138
        %v1217 = vpop.f32.mrb[0].mxu0
        %v1218 = vadd.f32 0.0, %v1217
        %v1219 = vpop.f32.mrb[0].mxu0
        %1220 = vmatprep.mubr.f32.mxu0 0.0
        %1221 = vmatmul.mubr.f32.gmra.mrb[0].mxu0 %v1141
        %v1222 = vpop.f32.mrb[0].mxu0
        %v1223 = vadd.f32 0.0, %v1222
        %v1224 = vpop.f32.mrb[0].mxu0
        %1225 = vmatprep.mubr.f32.mxu0 0.0
        %1226 = vmatmul.mubr.f32.gmra.mrb[0].mxu0 %v1144
        %v1227 = vpop.f32.mrb[0].mxu0
        %v1228 = vadd.f32 0.0, %v1227
        %v1229 = vpop.f32.mrb[0].mxu0
        %1230 = vdwg.mxu0
        %v1231 = vadd.f32 %v1121, %v1213
        %v1232 = vadd.f32 %v1122, %v1218
        %v1233 = vadd.f32 %v1123, %v1223
        %v1234 = vadd.f32 %v1124, %v1228
        %s1235 = scalar_lea.vmem %s5, 64
        %v1236 = vld [vmem:[%s1235] sm:$0xff]
        %v1237 = vld [vmem:[%s1235 + $0x8] sm:$0xff]
        %v1238 = vld [vmem:[%s1235 + $0x10] sm:$0xff]
        %v1239 = vld [vmem:[%s1235 + $0x18] sm:$0xff]
        %1240 = vrot.lane.b32.xlu0 %v1002, 126
        %v1241 = vpop.permute.xlu0 %1240
        %v1244 = vsel %vm1003, %v1236, 0
        %v1247 = vsel %vm1003, %v1237, 0
        %v1250 = vsel %vm1003, %v1238, 0
        %v1253 = vsel %vm1003, %v1239, 0
        %1255 = vmatprep.subr.mxu0 0.0
        %1256 = vmatpush1.msra.mxu0 %v1241
        %1257 = vmatprep.subr.mxu0 0.0
        %1258 = vmatpush1.msra.mxu0 0.0
        %1259 = vmatprep.subr.mxu0 0.0
        %1260 = vmatpush1.msra.mxu0 0.0
        %1261 = vmatprep.subr.mxu0 0.0
        %1262 = vmatpush1.msra.mxu0 0.0
        %1263 = vmatprep.subr.mxu0 0.0
        %1264 = vmatpush1.msra.mxu0 0.0
        %1265 = vmatprep.subr.mxu0 0.0
        %1266 = vmatpush1.msra.mxu0 0.0
        %1267 = vmatprep.subr.mxu0 0.0
        %1268 = vmatpush1.msra.mxu0 0.0
        %1269 = vmatprep.subr.mxu0 0.0
        %1270 = vmatpush1.msra.mxu0 0.0
        %1271 = vmatprep.subr.mxu0 0.0
        %1272 = vmatpush1.msra.mxu0 0.0
        %1273 = vmatprep.subr.mxu0 0.0
        %1274 = vmatpush1.msra.mxu0 0.0
        %1275 = vmatprep.subr.mxu0 0.0
        %1276 = vmatpush1.msra.mxu0 0.0
        %1277 = vmatprep.subr.mxu0 0.0
        %1278 = vmatpush1.msra.mxu0 0.0
        %1279 = vmatprep.subr.mxu0 0.0
        %1280 = vmatpush1.msra.mxu0 0.0
        %1281 = vmatprep.subr.mxu0 0.0
        %1282 = vmatpush1.msra.mxu0 0.0
        %1283 = vmatprep.subr.mxu0 0.0
        %1284 = vmatpush1.msra.mxu0 0.0
        %1285 = vmatprep.subr.mxu0 0.0
        %1286 = vmatpush1.msra.mxu0 0.0
        %1287 = vmatprep.subr.mxu0 0.0
        %1288 = vmatpush1.msra.mxu0 0.0
        %1289 = vmatprep.subr.mxu0 0.0
        %1290 = vmatpush1.msra.mxu0 0.0
        %1291 = vmatprep.subr.mxu0 0.0
        %1292 = vmatpush1.msra.mxu0 0.0
        %1293 = vmatprep.subr.mxu0 0.0
        %1294 = vmatpush1.msra.mxu0 0.0
        %1295 = vmatprep.subr.mxu0 0.0
        %1296 = vmatpush1.msra.mxu0 0.0
        %1297 = vmatprep.subr.mxu0 0.0
        %1298 = vmatpush1.msra.mxu0 0.0
        %1299 = vmatprep.subr.mxu0 0.0
        %1300 = vmatpush1.msra.mxu0 0.0
        %1301 = vmatprep.subr.mxu0 0.0
        %1302 = vmatpush1.msra.mxu0 0.0
        %1303 = vmatprep.subr.mxu0 0.0
        %1304 = vmatpush1.msra.mxu0 0.0
        %1305 = vmatprep.subr.mxu0 0.0
        %1306 = vmatpush1.msra.mxu0 0.0
        %1307 = vmatprep.subr.mxu0 0.0
        %1308 = vmatpush1.msra.mxu0 0.0
        %1309 = vmatprep.subr.mxu0 0.0
        %1310 = vmatpush1.msra.mxu0 0.0
        %1311 = vmatprep.subr.mxu0 0.0
        %1312 = vmatpush1.msra.mxu0 0.0
        %1313 = vmatprep.subr.mxu0 0.0
        %1314 = vmatpush1.msra.mxu0 0.0
        %1315 = vmatprep.subr.mxu0 0.0
        %1316 = vmatpush1.msra.mxu0 0.0
        %1317 = vmatprep.subr.mxu0 0.0
        %1318 = vmatpush1.msra.mxu0 0.0
        %1319 = vmatprep.mubr.f32.mxu0 0.0
        %1320 = vmatmul.mubr.f32.gmra.mrb[0].mxu0 %v1244
        %v1321 = vpop.f32.mrb[0].mxu0
        %v1322 = vadd.f32 0.0, %v1321
        %v1323 = vpop.f32.mrb[0].mxu0
        %1324 = vmatprep.mubr.f32.mxu0 0.0
        %1325 = vmatmul.mubr.f32.gmra.mrb[0].mxu0 %v1247
        %v1326 = vpop.f32.mrb[0].mxu0
        %v1327 = vadd.f32 0.0, %v1326
        %v1328 = vpop.f32.mrb[0].mxu0
        %1329 = vmatprep.mubr.f32.mxu0 0.0
        %1330 = vmatmul.mubr.f32.gmra.mrb[0].mxu0 %v1250
        %v1331 = vpop.f32.mrb[0].mxu0
        %v1332 = vadd.f32 0.0, %v1331
        %v1333 = vpop.f32.mrb[0].mxu0
        %1334 = vmatprep.mubr.f32.mxu0 0.0
        %1335 = vmatmul.mubr.f32.gmra.mrb[0].mxu0 %v1253
        %v1336 = vpop.f32.mrb[0].mxu0
        %v1337 = vadd.f32 0.0, %v1336
        %v1338 = vpop.f32.mrb[0].mxu0
        %1339 = vdwg.mxu0
        %v1340 = vadd.f32 %v1231, %v1322
        %v1341 = vadd.f32 %v1232, %v1327
        %v1342 = vadd.f32 %v1233, %v1332
        %v1343 = vadd.f32 %v1234, %v1337
        %v1344 = vmax.f32 %v1340, 0.0
        %v1345 = vmax.f32 %v1341, 0.0
        %v1346 = vmax.f32 %v1342, 0.0
        %v1347 = vmax.f32 %v1343, 0.0
        %1348 = vst.msk [vmem:[#allocation5] sm:$0xff] %vm696, 0.0
        %1349 = vst.msk [vmem:[#allocation5 + $0x8] sm:$0xff] %vm696, 0.0
        %1350 = vst.msk [vmem:[#allocation5 + $0x10] sm:$0xff] %vm696, 0.0
        %1351 = vst.msk [vmem:[#allocation5 + $0x18] sm:$0xff] %vm696, 0.0
        %1356 = vrot.lane.b32.xlu0 %v1344, 1
        %v1357 = vpop.permute.xlu0 %1356
        %1358 = vrot.lane.b32.xlu0 %v1345, 1
        %v1359 = vpop.permute.xlu0 %1358
        %1360 = vrot.lane.b32.xlu0 %v1346, 1
        %v1361 = vpop.permute.xlu0 %1360
        %1362 = vrot.lane.b32.xlu0 %v1347, 1
        %v1363 = vpop.permute.xlu0 %1362
        %1368 = vst.msk [vmem:[#allocation5] sm:$0xff] %vm717, %v1357
        %1369 = vst.msk [vmem:[#allocation5 + $0x8] sm:$0xff] %vm717, %v1359
        %1370 = vst.msk [vmem:[#allocation5 + $0x10] sm:$0xff] %vm717, %v1361
        %1371 = vst.msk [vmem:[#allocation5 + $0x18] sm:$0xff] %vm717, %v1363
        %v1372 = vld [vmem:[%s8] sm:$0xf]
        %v1373 = vld [vmem:[%s7] sm:$0xf]
        %v1374 = vld [vmem:[#allocation5] sm:$0xff]
        %v1375 = vld [vmem:[#allocation5 + $0x8] sm:$0xff]
        %v1376 = vld [vmem:[#allocation5 + $0x10] sm:$0xff]
        %v1377 = vld [vmem:[#allocation5 + $0x18] sm:$0xff]
        %v1379 = vsel %vm728, %v1373, 0
        %1381 = vmatprep.subr.mxu0 0.0
        %1382 = vmatpush1.msra.mxu0 %v1374
        %1383 = vmatprep.subr.mxu0 0.0
        %1384 = vmatpush1.msra.mxu0 %v1375
        %1385 = vmatprep.subr.mxu0 0.0
        %1386 = vmatpush1.msra.mxu0 %v1376
        %1387 = vmatprep.subr.mxu0 0.0
        %1388 = vmatpush1.msra.mxu0 %v1377
        %1389 = vmatprep.subr.mxu0 0.0
        %1390 = vmatpush1.msra.mxu0 0.0
        %1391 = vmatprep.subr.mxu0 0.0
        %1392 = vmatpush1.msra.mxu0 0.0
        %1393 = vmatprep.subr.mxu0 0.0
        %1394 = vmatpush1.msra.mxu0 0.0
        %1395 = vmatprep.subr.mxu0 0.0
        %1396 = vmatpush1.msra.mxu0 0.0
        %1397 = vmatprep.subr.mxu0 0.0
        %1398 = vmatpush1.msra.mxu0 0.0
        %1399 = vmatprep.subr.mxu0 0.0
        %1400 = vmatpush1.msra.mxu0 0.0
        %1401 = vmatprep.subr.mxu0 0.0
        %1402 = vmatpush1.msra.mxu0 0.0
        %1403 = vmatprep.subr.mxu0 0.0
        %1404 = vmatpush1.msra.mxu0 0.0
        %1405 = vmatprep.subr.mxu0 0.0
        %1406 = vmatpush1.msra.mxu0 0.0
        %1407 = vmatprep.subr.mxu0 0.0
        %1408 = vmatpush1.msra.mxu0 0.0
        %1409 = vmatprep.subr.mxu0 0.0
        %1410 = vmatpush1.msra.mxu0 0.0
        %1411 = vmatprep.subr.mxu0 0.0
        %1412 = vmatpush1.msra.mxu0 0.0
        %1413 = vmatprep.subr.mxu0 0.0
        %1414 = vmatpush1.msra.mxu0 0.0
        %1415 = vmatprep.subr.mxu0 0.0
        %1416 = vmatpush1.msra.mxu0 0.0
        %1417 = vmatprep.subr.mxu0 0.0
        %1418 = vmatpush1.msra.mxu0 0.0
        %1419 = vmatprep.subr.mxu0 0.0
        %1420 = vmatpush1.msra.mxu0 0.0
        %1421 = vmatprep.subr.mxu0 0.0
        %1422 = vmatpush1.msra.mxu0 0.0
        %1423 = vmatprep.subr.mxu0 0.0
        %1424 = vmatpush1.msra.mxu0 0.0
        %1425 = vmatprep.subr.mxu0 0.0
        %1426 = vmatpush1.msra.mxu0 0.0
        %1427 = vmatprep.subr.mxu0 0.0
        %1428 = vmatpush1.msra.mxu0 0.0
        %1429 = vmatprep.subr.mxu0 0.0
        %1430 = vmatpush1.msra.mxu0 0.0
        %1431 = vmatprep.subr.mxu0 0.0
        %1432 = vmatpush1.msra.mxu0 0.0
        %1433 = vmatprep.subr.mxu0 0.0
        %1434 = vmatpush1.msra.mxu0 0.0
        %1435 = vmatprep.subr.mxu0 0.0
        %1436 = vmatpush1.msra.mxu0 0.0
        %1437 = vmatprep.subr.mxu0 0.0
        %1438 = vmatpush1.msra.mxu0 0.0
        %1439 = vmatprep.subr.mxu0 0.0
        %1440 = vmatpush1.msra.mxu0 0.0
        %1441 = vmatprep.subr.mxu0 0.0
        %1442 = vmatpush1.msra.mxu0 0.0
        %1443 = vmatprep.subr.mxu0 0.0
        %1444 = vmatpush1.msra.mxu0 0.0
        %1445 = vmatprep.mubr.f32.mxu0 0.0
        %1446 = vmatmul.mubr.f32.gmra.mrb[0].mxu0 %v1379
        %v1447 = vpop.f32.mrb[0].mxu0
        %v1448 = vadd.f32 0.0, %v1447
        %v1449 = vpop.f32.mrb[0].mxu0
        %1450 = vdwg.mxu0
        %1452 = vset.pattern.permute.xlu0 0
        %1453 = vperm.xlu0 %1452, %v1372
        %v1454 = vpop.permute.xlu0 %1453
        %v1456 = vadd.f32 %v1454, %v1448
        %s1457 = scalar_lea.vmem %s7, 4
        %v1458 = vld [vmem:[%s1457] sm:$0xf]
        %1463 = vrot.lane.b32.xlu0 %v1374, 127
        %v1464 = vpop.permute.xlu0 %1463
        %1465 = vrot.lane.b32.xlu0 %v1375, 127
        %v1466 = vpop.permute.xlu0 %1465
        %1467 = vrot.lane.b32.xlu0 %v1376, 127
        %v1468 = vpop.permute.xlu0 %1467
        %1469 = vrot.lane.b32.xlu0 %v1377, 127
        %v1470 = vpop.permute.xlu0 %1469
        %v1476 = vsel %vm728, %v1458, 0
        %1478 = vmatprep.subr.mxu0 0.0
        %1479 = vmatpush1.msra.mxu0 %v1464
        %1480 = vmatprep.subr.mxu0 0.0
        %1481 = vmatpush1.msra.mxu0 %v1466
        %1482 = vmatprep.subr.mxu0 0.0
        %1483 = vmatpush1.msra.mxu0 %v1468
        %1484 = vmatprep.subr.mxu0 0.0
        %1485 = vmatpush1.msra.mxu0 %v1470
        %1486 = vmatprep.subr.mxu0 0.0
        %1487 = vmatpush1.msra.mxu0 0.0
        %1488 = vmatprep.subr.mxu0 0.0
        %1489 = vmatpush1.msra.mxu0 0.0
        %1490 = vmatprep.subr.mxu0 0.0
        %1491 = vmatpush1.msra.mxu0 0.0
        %1492 = vmatprep.subr.mxu0 0.0
        %1493 = vmatpush1.msra.mxu0 0.0
        %1494 = vmatprep.subr.mxu0 0.0
        %1495 = vmatpush1.msra.mxu0 0.0
        %1496 = vmatprep.subr.mxu0 0.0
        %1497 = vmatpush1.msra.mxu0 0.0
        %1498 = vmatprep.subr.mxu0 0.0
        %1499 = vmatpush1.msra.mxu0 0.0
        %1500 = vmatprep.subr.mxu0 0.0
        %1501 = vmatpush1.msra.mxu0 0.0
        %1502 = vmatprep.subr.mxu0 0.0
        %1503 = vmatpush1.msra.mxu0 0.0
        %1504 = vmatprep.subr.mxu0 0.0
        %1505 = vmatpush1.msra.mxu0 0.0
        %1506 = vmatprep.subr.mxu0 0.0
        %1507 = vmatpush1.msra.mxu0 0.0
        %1508 = vmatprep.subr.mxu0 0.0
        %1509 = vmatpush1.msra.mxu0 0.0
        %1510 = vmatprep.subr.mxu0 0.0
        %1511 = vmatpush1.msra.mxu0 0.0
        %1512 = vmatprep.subr.mxu0 0.0
        %1513 = vmatpush1.msra.mxu0 0.0
        %1514 = vmatprep.subr.mxu0 0.0
        %1515 = vmatpush1.msra.mxu0 0.0
        %1516 = vmatprep.subr.mxu0 0.0
        %1517 = vmatpush1.msra.mxu0 0.0
        %1518 = vmatprep.subr.mxu0 0.0
        %1519 = vmatpush1.msra.mxu0 0.0
        %1520 = vmatprep.subr.mxu0 0.0
        %1521 = vmatpush1.msra.mxu0 0.0
        %1522 = vmatprep.subr.mxu0 0.0
        %1523 = vmatpush1.msra.mxu0 0.0
        %1524 = vmatprep.subr.mxu0 0.0
        %1525 = vmatpush1.msra.mxu0 0.0
        %1526 = vmatprep.subr.mxu0 0.0
        %1527 = vmatpush1.msra.mxu0 0.0
        %1528 = vmatprep.subr.mxu0 0.0
        %1529 = vmatpush1.msra.mxu0 0.0
        %1530 = vmatprep.subr.mxu0 0.0
        %1531 = vmatpush1.msra.mxu0 0.0
        %1532 = vmatprep.subr.mxu0 0.0
        %1533 = vmatpush1.msra.mxu0 0.0
        %1534 = vmatprep.subr.mxu0 0.0
        %1535 = vmatpush1.msra.mxu0 0.0
        %1536 = vmatprep.subr.mxu0 0.0
        %1537 = vmatpush1.msra.mxu0 0.0
        %1538 = vmatprep.subr.mxu0 0.0
        %1539 = vmatpush1.msra.mxu0 0.0
        %1540 = vmatprep.subr.mxu0 0.0
        %1541 = vmatpush1.msra.mxu0 0.0
        %1542 = vmatprep.mubr.f32.mxu0 0.0
        %1543 = vmatmul.mubr.f32.gmra.mrb[0].mxu0 %v1476
        %v1544 = vpop.f32.mrb[0].mxu0
        %v1545 = vadd.f32 0.0, %v1544
        %v1546 = vpop.f32.mrb[0].mxu0
        %1547 = vdwg.mxu0
        %v1548 = vadd.f32 %v1456, %v1545
        %s1549 = scalar_lea.vmem %s7, 8
        %v1550 = vld [vmem:[%s1549] sm:$0xf]
        %1551 = vrot.lane.b32.xlu0 %v1374, 126
        %v1552 = vpop.permute.xlu0 %1551
        %1553 = vrot.lane.b32.xlu0 %v1375, 126
        %v1554 = vpop.permute.xlu0 %1553
        %1555 = vrot.lane.b32.xlu0 %v1376, 126
        %v1556 = vpop.permute.xlu0 %1555
        %1557 = vrot.lane.b32.xlu0 %v1377, 126
        %v1558 = vpop.permute.xlu0 %1557
        %v1564 = vsel %vm728, %v1550, 0
        %1566 = vmatprep.subr.mxu0 0.0
        %1567 = vmatpush1.msra.mxu0 %v1552
        %1568 = vmatprep.subr.mxu0 0.0
        %1569 = vmatpush1.msra.mxu0 %v1554
        %1570 = vmatprep.subr.mxu0 0.0
        %1571 = vmatpush1.msra.mxu0 %v1556
        %1572 = vmatprep.subr.mxu0 0.0
        %1573 = vmatpush1.msra.mxu0 %v1558
        %1574 = vmatprep.subr.mxu0 0.0
        %1575 = vmatpush1.msra.mxu0 0.0
        %1576 = vmatprep.subr.mxu0 0.0
        %1577 = vmatpush1.msra.mxu0 0.0
        %1578 = vmatprep.subr.mxu0 0.0
        %1579 = vmatpush1.msra.mxu0 0.0
        %1580 = vmatprep.subr.mxu0 0.0
        %1581 = vmatpush1.msra.mxu0 0.0
        %1582 = vmatprep.subr.mxu0 0.0
        %1583 = vmatpush1.msra.mxu0 0.0
        %1584 = vmatprep.subr.mxu0 0.0
        %1585 = vmatpush1.msra.mxu0 0.0
        %1586 = vmatprep.subr.mxu0 0.0
        %1587 = vmatpush1.msra.mxu0 0.0
        %1588 = vmatprep.subr.mxu0 0.0
        %1589 = vmatpush1.msra.mxu0 0.0
        %1590 = vmatprep.subr.mxu0 0.0
        %1591 = vmatpush1.msra.mxu0 0.0
        %1592 = vmatprep.subr.mxu0 0.0
        %1593 = vmatpush1.msra.mxu0 0.0
        %1594 = vmatprep.subr.mxu0 0.0
        %1595 = vmatpush1.msra.mxu0 0.0
        %1596 = vmatprep.subr.mxu0 0.0
        %1597 = vmatpush1.msra.mxu0 0.0
        %1598 = vmatprep.subr.mxu0 0.0
        %1599 = vmatpush1.msra.mxu0 0.0
        %1600 = vmatprep.subr.mxu0 0.0
        %1601 = vmatpush1.msra.mxu0 0.0
        %1602 = vmatprep.subr.mxu0 0.0
        %1603 = vmatpush1.msra.mxu0 0.0
        %1604 = vmatprep.subr.mxu0 0.0
        %1605 = vmatpush1.msra.mxu0 0.0
        %1606 = vmatprep.subr.mxu0 0.0
        %1607 = vmatpush1.msra.mxu0 0.0
        %1608 = vmatprep.subr.mxu0 0.0
        %1609 = vmatpush1.msra.mxu0 0.0
        %1610 = vmatprep.subr.mxu0 0.0
        %1611 = vmatpush1.msra.mxu0 0.0
        %1612 = vmatprep.subr.mxu0 0.0
        %1613 = vmatpush1.msra.mxu0 0.0
        %1614 = vmatprep.subr.mxu0 0.0
        %1615 = vmatpush1.msra.mxu0 0.0
        %1616 = vmatprep.subr.mxu0 0.0
        %1617 = vmatpush1.msra.mxu0 0.0
        %1618 = vmatprep.subr.mxu0 0.0
        %1619 = vmatpush1.msra.mxu0 0.0
        %1620 = vmatprep.subr.mxu0 0.0
        %1621 = vmatpush1.msra.mxu0 0.0
        %1622 = vmatprep.subr.mxu0 0.0
        %1623 = vmatpush1.msra.mxu0 0.0
        %1624 = vmatprep.subr.mxu0 0.0
        %1625 = vmatpush1.msra.mxu0 0.0
        %1626 = vmatprep.subr.mxu0 0.0
        %1627 = vmatpush1.msra.mxu0 0.0
        %1628 = vmatprep.subr.mxu0 0.0
        %1629 = vmatpush1.msra.mxu0 0.0
        %1630 = vmatprep.mubr.f32.mxu0 0.0
        %1631 = vmatmul.mubr.f32.gmra.mrb[0].mxu0 %v1564
        %v1632 = vpop.f32.mrb[0].mxu0
        %v1633 = vadd.f32 0.0, %v1632
        %v1634 = vpop.f32.mrb[0].mxu0
        %1635 = vdwg.mxu0
        %v1636 = vadd.f32 %v1548, %v1633
        %vm1637 = vcmask 125952
        %1638 = vst.msk [vmem:[%s323] sm:$0xf] %vm1637, %v1636
        %s1639 = sand.u32 %s225, 1
        %s1640 = scalar_lea.sflag [#allocation7], %s1639
        %s1641 = sand.u32 %s225, 1
        %s1642 = smul.addr %s1641, 4
        %s1643 = scalar_lea.vmem [#allocation6], %s1642
        // Predicated region
        $region57: #{autoencoder_forward.1} parent=55 // pred_check
          %p1644 = pneg %p235
        $region58: #{autoencoder_forward.1} parent=55 // pred_check_branch
          %1646 = sbr.rel (%p1644) target = $region60
        $region59: #{autoencoder_forward.1} parent=55 // pred_region
          %s1648 = ssub.s32 64, 64
          %1649 = vsyncadd %s1640, %s1648
          %s1650 = smul.addr %s23, 64
          %s1651 = scalar_lea.hbm %s9, %s1650
          %s1653 = sshll.u32 %s1643, 4
          %s1654 = int_to_ptr.vmem [resolvable:$true] %s1653
          %1656 = dma.vmem_to_hbm [thread:$0]  %s1654, 64, %s1651, %s1640
        $region60: #{autoencoder_forward.1} parent=55 // pred_fallthru
          _
      $region56: #{autoencoder_forward.1} parent=5 // pred_fallthru
        _
      %p1657 = scmp.le.s32.totalorder 2, %s18
      // Predicated region
      $region61: #{autoencoder_forward.1} parent=5 // pred_check
        %p1658 = pneg %p1657
      $region62: #{autoencoder_forward.1} parent=5 // pred_check_branch
        %1660 = sbr.rel (%p1658) target = $region64
      $region63: #{autoencoder_forward.1} parent=5 // pred_region
        %s1661 = ssub.s32 %s18, 2
        // Predicated region
        $region65: #{autoencoder_forward.1} parent=63 // pred_check
          %p1662 = pneg %p241
        $region66: #{autoencoder_forward.1} parent=63 // pred_check_branch
          %1664 = sbr.rel (%p1662) target = $region68
        $region67: #{autoencoder_forward.1} parent=63 // pred_region
          %s1665 = sand.u32 %s226, 1
          %s1666 = scalar_lea.sflag [#allocation7], %s1665
          %s1667 = sand.u32 %s226, 1
          %s1668 = smul.addr %s1667, 4
          %s1669 = scalar_lea.vmem [#allocation6], %s1668
          %1670 = dma.done %s1666, 64
        $region68: #{autoencoder_forward.1} parent=63 // pred_fallthru
          _
      $region64: #{autoencoder_forward.1} parent=5 // pred_fallthru
        _
    $region6: #{autoencoder_forward.1} parent=1 // loop_footer
      %s22 = sadd.s32 1, %s18
    $region7: #{autoencoder_forward.1} parent=1 // loop_footer_branch
      %17 = sbr.rel target = $region3
    $region8: #{autoencoder_forward.1} parent=1 // loop_exit
      _
    %1671 = vsyncpa [#allocation7], 1
    %s1672 = scalar_lea.sflag [#allocation7], 1
    %1673 = vsyncpa %s1672, 1

</llo_original>
